<compile_context>
chip_gen: v5e
topology: v5e:2x2
jax: 0.10.0
libtpu: 0.0.40
codegen_flags: <defaults>
</compile_context>

<pallas_src>
import jax
import jax.numpy as jnp
from jax.experimental import pallas as pl
from jax.experimental.pallas import tpu as pltpu

_LANES = 128
_VMEM_LIMIT_BYTES = 48 * 1024 * 1024   # requested scoped VMEM (v7x-safe)
_VMEM_BUDGET_BYTES = 36 * 1024 * 1024  # what the tile-size heuristic accounts for


def _round_up(x: int, m: int) -> int:
    return (x + m - 1) // m * m


def _ffn_kernel(x_ref, w1_ref, b1_ref, w2_ref, b2_ref, o_ref):
    # First linear: (tr, Cp) @ (Cp, Hp), f32 accumulation on the MXU.
    h = jnp.dot(x_ref[...], w1_ref[...],
                preferred_element_type=jnp.float32) + b1_ref[...]
    # GELU, tanh approximation (matches torch.nn.GELU(approximate='tanh')).
    # Kept in f32: tanh runs on the EUP slot (free in a memory-bound kernel),
    # and v5e has no bf16 VPU/EUP.
    c = 0.7978845608028654  # sqrt(2/pi)
    g = 0.5 * h * (1.0 + jnp.tanh(c * (h + 0.044715 * (h * h * h))))
    # Second linear: (tr, Hp) @ (Hp, Cp).  Feed the MXU in the streaming dtype
    # (bf16 on v6e/v7x), accumulate in f32.
    o = jnp.dot(g.astype(w2_ref.dtype), w2_ref[...],
                preferred_element_type=jnp.float32) + b2_ref[...]
    o_ref[...] = o.astype(o_ref.dtype)


def _pick_tile_rows(rows: int, Cp: int, Hp: int, isz_c: int, isz_o: int,
                    max_tile: int) -> int:
    """Largest row-tile (multiple of 8) that fits the VMEM budget.

    Conservative accounting: weights counted double-buffered (covers the
    fallback path without pl.Buffered(1)), x/out tiles double-buffered, and
    the two f32 hidden temporaries (h, g) plus one cast copy of g.
    """
    weight_bytes = 4 * Cp * Hp * isz_c + 2 * (Hp + Cp) * 4
    per_row = 2 * Cp * (isz_c + isz_o) + Hp * (2 * 4 + isz_c)
    avail = max(_VMEM_BUDGET_BYTES - weight_bytes, 8 * per_row)
    tr = (avail // per_row) // 8 * 8
    return max(8, min(tr, max_tile, _round_up(rows, 8)))


def sparse_ffn(feats, w1, b1, w2, b2, *, max_tile_rows=1024, compute_dtype=None,
               out_dtype=None):
    """Fused FFN over sparse-tensor features.

    feats: [N, C]   w1: [C, H]   b1: [H]   w2: [H, C]   b2: [C]   ->  [N, C]
    compute_dtype: dtype used to stream x/W1/W2 into the MXU (pass
        jnp.bfloat16 on v6e/v7x to halve HBM traffic); accumulation and GELU
        are always f32.
    """
    N, C = feats.shape
    H = w1.shape[1]
    out_dtype = feats.dtype if out_dtype is None else out_dtype
    compute_dtype = feats.dtype if compute_dtype is None else compute_dtype
    isz = lambda d: jnp.dtype(d).itemsize

    # ---- lane-dense packing: P voxels per 128-lane row ---------------------
    P = _LANES // C if (C < _LANES and _LANES % C == 0) else 1
    Cp, Hp = P * C, P * H
    if P > 1:
        eye = jnp.eye(P, dtype=w1.dtype)
        w1 = jnp.kron(eye, w1)          # [P*C, P*H] block-diagonal replicate
        w2 = jnp.kron(eye, w2)          # [P*H, P*C] block-diagonal replicate
        b1 = jnp.tile(b1, P)
        b2 = jnp.tile(b2, P)

    # ---- tiling over packed rows; pad N so it packs & tiles cleanly --------
    rows = pl.cdiv(N, P)                               # packed rows (width Cp)
    tr = _pick_tile_rows(rows, Cp, Hp, isz(compute_dtype), isz(out_dtype),
                         max_tile_rows)
    if _round_up(rows, tr) // tr < 2 and rows >= 16:
        # Keep >= 2 grid steps so the parallel axis can span v7x's 2 TCs.
        tr = _round_up(pl.cdiv(rows, 2), 8)
    rows_pad = _round_up(rows, tr)
    n_pad = rows_pad * P

    x = feats
    if n_pad != N:
        x = jnp.pad(x, ((0, n_pad - N), (0, 0)))       # padded rows sliced off below
    x = x.reshape(rows_pad, Cp)

    # ---- dtype plumbing: stream x/W in compute_dtype, biases stay f32 ------
    x = x.astype(compute_dtype)
    w1 = w1.astype(compute_dtype)
    w2 = w2.astype(compute_dtype)
    b1 = b1.astype(jnp.float32).reshape(1, Hp)
    b2 = b2.astype(jnp.float32).reshape(1, Cp)

    cost = pl.CostEstimate(
        flops=4 * rows_pad * Cp * Hp,
        transcendentals=rows_pad * Hp,
        bytes_accessed=(rows_pad * Cp * (isz(compute_dtype) + isz(out_dtype))
                        + (w1.size + w2.size) * isz(compute_dtype)
                        + (b1.size + b2.size) * 4),
    )

    def _ffn_call(w_mode):
        wkw = {} if w_mode is None else {"pipeline_mode": w_mode}
        grid_spec = pltpu.PrefetchScalarGridSpec(
            num_scalar_prefetch=0,
            grid=(rows_pad // tr,),
            in_specs=[
                pl.BlockSpec((tr, Cp), lambda i: (i, 0)),          # x tile (streamed)
                pl.BlockSpec((Cp, Hp), lambda i: (0, 0), **wkw),   # W1 (resident)
                pl.BlockSpec((1, Hp), lambda i: (0, 0)),           # b1
                pl.BlockSpec((Hp, Cp), lambda i: (0, 0), **wkw),   # W2 (resident)
                pl.BlockSpec((1, Cp), lambda i: (0, 0)),           # b2
            ],
            out_specs=pl.BlockSpec((tr, Cp), lambda i: (i, 0)),
        )
        return pl.pallas_call(
            _ffn_kernel,
            out_shape=jax.ShapeDtypeStruct((rows_pad, Cp), out_dtype),
            grid_spec=grid_spec,
            compiler_params=pltpu.CompilerParams(
                dimension_semantics=("parallel",),
                vmem_limit_bytes=_VMEM_LIMIT_BYTES),
            cost_estimate=cost,
        )(x, w1, b1, w2, b2)

    try:
        # Weights have a constant index_map -> single-buffer them (halves
        # their VMEM footprint; matters at real sizes on v7x's 64 MiB VMEM).
        out_packed = _ffn_call(pl.Buffered(1))
    except Exception:
        # Fallback for jax builds without per-BlockSpec pipeline_mode.
        out_packed = _ffn_call(None)

    return out_packed.reshape(n_pad, C)[:N]


def _reference(feats, w1, b1, w2, b2):
    h = feats @ w1 + b1
    g = jax.nn.gelu(h, approximate=True)
    return g @ w2 + b2


if __name__ == "__main__":
    key = jax.random.PRNGKey(0)

    def make(C, H, N, k):
        ks = jax.random.split(k, 5)
        feats = jax.random.normal(ks[0], (N, C), jnp.float32)
        w1 = jax.random.normal(ks[1], (C, H), jnp.float32) * (1.0 / C ** 0.5)
        b1 = jax.random.normal(ks[2], (H,), jnp.float32) * 0.01
        w2 = jax.random.normal(ks[3], (H, C), jnp.float32) * (1.0 / H ** 0.5)
        b2 = jax.random.normal(ks[4], (C,), jnp.float32) * 0.01
        return feats, w1, b1, w2, b2

    k1, k2, k3 = jax.random.split(key, 3)

    # Config 1: C=32 (4 voxels packed per 128-lane row), non-aligned N=200.
    feats, w1, b1, w2, b2 = make(C=32, H=128, N=200, k=k1)
    out = jax.block_until_ready(sparse_ffn(feats, w1, b1, w2, b2))
    ref = _reference(feats, w1, b1, w2, b2)
    assert out.shape == ref.shape
    assert jnp.allclose(out, ref, atol=1e-4, rtol=1e-3), "f32 mismatch (cfg1)"

    # Same config through the bf16-streaming path (v6e/v7x recipe).
    out_bf16 = jax.block_until_ready(
        sparse_ffn(feats, w1, b1, w2, b2, compute_dtype=jnp.bfloat16))
    assert jnp.allclose(out_bf16, ref, atol=1e-1, rtol=1e-1), "bf16 mismatch"

    # Config 2: C=64 (2 voxels per row), aligned N=128.
    feats, w1, b1, w2, b2 = make(C=64, H=256, N=128, k=k2)
    out = jax.block_until_ready(sparse_ffn(feats, w1, b1, w2, b2))
    ref = _reference(feats, w1, b1, w2, b2)
    assert jnp.allclose(out, ref, atol=1e-4, rtol=1e-3), "f32 mismatch (cfg2)"

    # Config 3: C=128 (no packing, P=1), non-aligned N=300.
    feats, w1, b1, w2, b2 = make(C=128, H=512, N=300, k=k3)
    out = jax.block_until_ready(sparse_ffn(feats, w1, b1, w2, b2))
    ref = _reference(feats, w1, b1, w2, b2)
    assert jnp.allclose(out, ref, atol=1e-4, rtol=1e-3), "f32 mismatch (cfg3)"

    print("KERNEL_OK")
</pallas_src>

<mosaic_0001>
module attributes {stable_mosaic.version = 11 : i64} {
  func.func @_ffn_kernel(%arg0: i32, %arg1: memref<32x128xf32, #tpu.memory_space<vmem>>, %arg2: memref<128x512xf32, #tpu.memory_space<vmem>>, %arg3: memref<1x512xf32, #tpu.memory_space<vmem>>, %arg4: memref<512x128xf32, #tpu.memory_space<vmem>>, %arg5: memref<1x128xf32, #tpu.memory_space<vmem>>, %arg6: memref<32x128xf32, #tpu.memory_space<vmem>>) attributes {dimension_semantics = [#tpu.dimension_semantics<parallel>], iteration_bounds = array<i64: 2>, scalar_prefetch = 0 : i64, scratch_operands = 0 : i64, tpu.core_type = #tpu.core_type<tc>, window_params = [{transform_indices = @transform_0, window_bounds = array<i64: 32, 128>}, {pipeline_mode = #tpu.pipeline_mode<synchronous>, transform_indices = @transform_1, window_bounds = array<i64: 128, 512>}, {pipeline_mode = #tpu.pipeline_mode<synchronous>, transform_indices = @transform_2, window_bounds = array<i64: 1, 512>}, {pipeline_mode = #tpu.pipeline_mode<synchronous>, transform_indices = @transform_3, window_bounds = array<i64: 512, 128>}, {pipeline_mode = #tpu.pipeline_mode<synchronous>, transform_indices = @transform_4, window_bounds = array<i64: 1, 128>}, {transform_indices = @transform_5, window_bounds = array<i64: 32, 128>}]} {
    %c0 = arith.constant 0 : index
    %c0_0 = arith.constant 0 : index
    %0 = vector.load %arg1[%c0, %c0_0] : memref<32x128xf32, #tpu.memory_space<vmem>>, vector<32x128xf32>
    %c0_1 = arith.constant 0 : index
    %c0_2 = arith.constant 0 : index
    %1 = vector.load %arg2[%c0_1, %c0_2] : memref<128x512xf32, #tpu.memory_space<vmem>>, vector<128x512xf32>
    %cst = arith.constant dense<0.000000e+00> : vector<32x512xf32>
    %2 = tpu.matmul %0, %1, %cst {dimension_numbers = #tpu.dot_dimension_numbers<[1], [0], [0], [1], [0, 0, 1, 1], [], []>} : vector<32x128xf32>, vector<128x512xf32>, vector<32x512xf32> -> vector<32x512xf32>
    %c0_3 = arith.constant 0 : index
    %c0_4 = arith.constant 0 : index
    %3 = vector.load %arg3[%c0_3, %c0_4] : memref<1x512xf32, #tpu.memory_space<vmem>>, vector<1x512xf32>
    %4 = vector.broadcast %3 : vector<1x512xf32> to vector<32x512xf32>
    %5 = arith.addf %2, %4 : vector<32x512xf32>
    %cst_5 = arith.constant 5.000000e-01 : f32
    %6 = vector.broadcast %cst_5 : f32 to vector<32x512xf32>
    %7 = arith.mulf %6, %5 : vector<32x512xf32>
    %8 = arith.mulf %5, %5 : vector<32x512xf32>
    %9 = arith.mulf %8, %5 : vector<32x512xf32>
    %cst_6 = arith.constant 4.471500e-02 : f32
    %10 = vector.broadcast %cst_6 : f32 to vector<32x512xf32>
    %11 = arith.mulf %10, %9 : vector<32x512xf32>
    %12 = arith.addf %5, %11 : vector<32x512xf32>
    %cst_7 = arith.constant 0.797884583 : f32
    %13 = vector.broadcast %cst_7 : f32 to vector<32x512xf32>
    %14 = arith.mulf %13, %12 : vector<32x512xf32>
    %15 = math.tanh %14 : vector<32x512xf32>
    %cst_8 = arith.constant 1.000000e+00 : f32
    %16 = vector.broadcast %cst_8 : f32 to vector<32x512xf32>
    %17 = arith.addf %16, %15 : vector<32x512xf32>
    %18 = arith.mulf %7, %17 : vector<32x512xf32>
    %c0_9 = arith.constant 0 : index
    %c0_10 = arith.constant 0 : index
    %19 = vector.load %arg4[%c0_9, %c0_10] : memref<512x128xf32, #tpu.memory_space<vmem>>, vector<512x128xf32>
    %cst_11 = arith.constant dense<0.000000e+00> : vector<32x128xf32>
    %20 = tpu.matmul %18, %19, %cst_11 {dimension_numbers = #tpu.dot_dimension_numbers<[1], [0], [0], [1], [0, 0, 1, 1], [], []>} : vector<32x512xf32>, vector<512x128xf32>, vector<32x128xf32> -> vector<32x128xf32>
    %c0_12 = arith.constant 0 : index
    %c0_13 = arith.constant 0 : index
    %21 = vector.load %arg5[%c0_12, %c0_13] : memref<1x128xf32, #tpu.memory_space<vmem>>, vector<1x128xf32>
    %22 = vector.broadcast %21 : vector<1x128xf32> to vector<32x128xf32>
    %23 = arith.addf %20, %22 : vector<32x128xf32>
    %c0_14 = arith.constant 0 : index
    %c0_15 = arith.constant 0 : index
    %24 = vector.load %arg6[%c0_14, %c0_15] : memref<32x128xf32, #tpu.memory_space<vmem>>, vector<32x128xf32>
    tpu.vector_store %arg6[%c0_14, %c0_15], %23 {strides = array<i32>} : memref<32x128xf32, #tpu.memory_space<vmem>>, vector<32x128xf32>,
    return
  }
  func.func @transform_0(%arg0: i32) -> (i32, i32) {
    %c0_i32 = arith.constant 0 : i32
    %c0_i32_0 = arith.constant 0 : i32
    return %arg0, %c0_i32 : i32, i32
  }
  func.func @transform_1(%arg0: i32) -> (i32, i32) {
    %c0_i32 = arith.constant 0 : i32
    %c0_i32_0 = arith.constant 0 : i32
    %c0_i32_1 = arith.constant 0 : i32
    return %c0_i32, %c0_i32_0 : i32, i32
  }
  func.func @transform_2(%arg0: i32) -> (i32, i32) {
    %c0_i32 = arith.constant 0 : i32
    %c0_i32_0 = arith.constant 0 : i32
    %c0_i32_1 = arith.constant 0 : i32
    return %c0_i32, %c0_i32_0 : i32, i32
  }
  func.func @transform_3(%arg0: i32) -> (i32, i32) {
    %c0_i32 = arith.constant 0 : i32
    %c0_i32_0 = arith.constant 0 : i32
    %c0_i32_1 = arith.constant 0 : i32
    return %c0_i32, %c0_i32_0 : i32, i32
  }
  func.func @transform_4(%arg0: i32) -> (i32, i32) {
    %c0_i32 = arith.constant 0 : i32
    %c0_i32_0 = arith.constant 0 : i32
    %c0_i32_1 = arith.constant 0 : i32
    return %c0_i32, %c0_i32_0 : i32, i32
  }
  func.func @transform_5(%arg0: i32) -> (i32, i32) {
    %c0_i32 = arith.constant 0 : i32
    %c0_i32_0 = arith.constant 0 : i32
    return %arg0, %c0_i32 : i32, i32
  }
}

module attributes {stable_mosaic.version = 11 : i64} {
  func.func @_ffn_kernel(%arg0: i32, %arg1: memref<32x128xf32, #tpu.memory_space<vmem>>, %arg2: memref<128x512xf32, #tpu.memory_space<vmem>>, %arg3: memref<1x512xf32, #tpu.memory_space<vmem>>, %arg4: memref<512x128xf32, #tpu.memory_space<vmem>>, %arg5: memref<1x128xf32, #tpu.memory_space<vmem>>, %arg6: memref<32x128xf32, #tpu.memory_space<vmem>>) attributes {dimension_semantics = [#tpu.dimension_semantics<parallel>], iteration_bounds = array<i64: 2>, scalar_prefetch = 0 : i64, scratch_operands = 0 : i64, tpu.core_type = #tpu.core_type<tc>, window_params = [{transform_indices = @transform_0, window_bounds = array<i64: 32, 128>}, {pipeline_mode = #tpu.pipeline_mode<synchronous>, transform_indices = @transform_1, window_bounds = array<i64: 128, 512>}, {pipeline_mode = #tpu.pipeline_mode<synchronous>, transform_indices = @transform_2, window_bounds = array<i64: 1, 512>}, {pipeline_mode = #tpu.pipeline_mode<synchronous>, transform_indices = @transform_3, window_bounds = array<i64: 512, 128>}, {pipeline_mode = #tpu.pipeline_mode<synchronous>, transform_indices = @transform_4, window_bounds = array<i64: 1, 128>}, {transform_indices = @transform_5, window_bounds = array<i64: 32, 128>}]} {
    %c0 = arith.constant 0 : index
    %c0_0 = arith.constant 0 : index
    %0 = vector.load %arg1[%c0, %c0_0] : memref<32x128xf32, #tpu.memory_space<vmem>>, vector<32x128xf32>
    %c0_1 = arith.constant 0 : index
    %c0_2 = arith.constant 0 : index
    %1 = vector.load %arg2[%c0_1, %c0_2] : memref<128x512xf32, #tpu.memory_space<vmem>>, vector<128x512xf32>
    %cst = arith.constant dense<0.000000e+00> : vector<32x512xf32>
    %2 = tpu.matmul %0, %1, %cst {dimension_numbers = #tpu.dot_dimension_numbers<[1], [0], [0], [1], [0, 0, 1, 1], [], []>} : vector<32x128xf32>, vector<128x512xf32>, vector<32x512xf32> -> vector<32x512xf32>
    %c0_3 = arith.constant 0 : index
    %c0_4 = arith.constant 0 : index
    %3 = vector.load %arg3[%c0_3, %c0_4] : memref<1x512xf32, #tpu.memory_space<vmem>>, vector<1x512xf32>
    %4 = vector.broadcast %3 : vector<1x512xf32> to vector<32x512xf32>
    %5 = arith.addf %2, %4 : vector<32x512xf32>
    %cst_5 = arith.constant 5.000000e-01 : f32
    %6 = vector.broadcast %cst_5 : f32 to vector<32x512xf32>
    %7 = arith.mulf %6, %5 : vector<32x512xf32>
    %8 = arith.mulf %5, %5 : vector<32x512xf32>
    %9 = arith.mulf %8, %5 : vector<32x512xf32>
    %cst_6 = arith.constant 4.471500e-02 : f32
    %10 = vector.broadcast %cst_6 : f32 to vector<32x512xf32>
    %11 = arith.mulf %10, %9 : vector<32x512xf32>
    %12 = arith.addf %5, %11 : vector<32x512xf32>
    %cst_7 = arith.constant 0.797884583 : f32
    %13 = vector.broadcast %cst_7 : f32 to vector<32x512xf32>
    %14 = arith.mulf %13, %12 : vector<32x512xf32>
    %15 = math.tanh %14 : vector<32x512xf32>
    %cst_8 = arith.constant 1.000000e+00 : f32
    %16 = vector.broadcast %cst_8 : f32 to vector<32x512xf32>
    %17 = arith.addf %16, %15 : vector<32x512xf32>
    %18 = arith.mulf %7, %17 : vector<32x512xf32>
    %c0_9 = arith.constant 0 : index
    %c0_10 = arith.constant 0 : index
    %19 = vector.load %arg4[%c0_9, %c0_10] : memref<512x128xf32, #tpu.memory_space<vmem>>, vector<512x128xf32>
    %cst_11 = arith.constant dense<0.000000e+00> : vector<32x128xf32>
    %20 = tpu.matmul %18, %19, %cst_11 {dimension_numbers = #tpu.dot_dimension_numbers<[1], [0], [0], [1], [0, 0, 1, 1], [], []>} : vector<32x512xf32>, vector<512x128xf32>, vector<32x128xf32> -> vector<32x128xf32>
    %c0_12 = arith.constant 0 : index
    %c0_13 = arith.constant 0 : index
    %21 = vector.load %arg5[%c0_12, %c0_13] : memref<1x128xf32, #tpu.memory_space<vmem>>, vector<1x128xf32>
    %22 = vector.broadcast %21 : vector<1x128xf32> to vector<32x128xf32>
    %23 = arith.addf %20, %22 : vector<32x128xf32>
    %c0_14 = arith.constant 0 : index
    %c0_15 = arith.constant 0 : index
    %24 = vector.load %arg6[%c0_14, %c0_15] : memref<32x128xf32, #tpu.memory_space<vmem>>, vector<32x128xf32>
    tpu.vector_store %arg6[%c0_14, %c0_15], %23 {strides = array<i32>} : memref<32x128xf32, #tpu.memory_space<vmem>>, vector<32x128xf32>,
    return
  }
  func.func @transform_0(%arg0: i32) -> (i32, i32) {
    %c0_i32 = arith.constant 0 : i32
    %c0_i32_0 = arith.constant 0 : i32
    return %arg0, %c0_i32 : i32, i32
  }
  func.func @transform_1(%arg0: i32) -> (i32, i32) {
    %c0_i32 = arith.constant 0 : i32
    %c0_i32_0 = arith.constant 0 : i32
    %c0_i32_1 = arith.constant 0 : i32
    return %c0_i32, %c0_i32_0 : i32, i32
  }
  func.func @transform_2(%arg0: i32) -> (i32, i32) {
    %c0_i32 = arith.constant 0 : i32
    %c0_i32_0 = arith.constant 0 : i32
    %c0_i32_1 = arith.constant 0 : i32
    return %c0_i32, %c0_i32_0 : i32, i32
  }
  func.func @transform_3(%arg0: i32) -> (i32, i32) {
    %c0_i32 = arith.constant 0 : i32
    %c0_i32_0 = arith.constant 0 : i32
    %c0_i32_1 = arith.constant 0 : i32
    return %c0_i32, %c0_i32_0 : i32, i32
  }
  func.func @transform_4(%arg0: i32) -> (i32, i32) {
    %c0_i32 = arith.constant 0 : i32
    %c0_i32_0 = arith.constant 0 : i32
    %c0_i32_1 = arith.constant 0 : i32
    return %c0_i32, %c0_i32_0 : i32, i32
  }
  func.func @transform_5(%arg0: i32) -> (i32, i32) {
    %c0_i32 = arith.constant 0 : i32
    %c0_i32_0 = arith.constant 0 : i32
    return %arg0, %c0_i32 : i32, i32
  }
}

</mosaic_0001>

<llo_original>
// kernel: tpu_custom_call.1
$region0: #{tpu_custom_call.1}
  #allocation0 [shape = 'u32[]', space=smem, size = 0x4, offset = 0x4, fixed_abs, tag = 'smem constant byte address 0x4 - core index']
  #allocation1 [shape = 'u32[72,128]{1,0:T(1,128)}', space=vmem, size = 0x9000, scoped, tag = 'internal scratch']
  %s0 = inlined_call_operand.hbm [shape: f32[64,128], index: 0, kind: input, shape index: {}]
  %s1 = inlined_call_operand.hbm [shape: f32[128,512], index: 1, kind: input, shape index: {}]
  %s2 = inlined_call_operand.hbm [shape: f32[1,512], index: 2, kind: input, shape index: {}]
  %s3 = inlined_call_operand.hbm [shape: f32[512,128], index: 3, kind: input, shape index: {}]
  %s4 = inlined_call_operand.vmem [shape: f32[1,128], index: 4, kind: input, shape index: {}]
  %s5 = inlined_call_operand.hbm [shape: f32[64,128], index: 5, kind: output, shape index: {}]
  %s6 = sld [smem:[#allocation0]]
  $region69: #{tpu_custom_call.1} parent=0
    _
  %s8 = ssub.s32 1, %s6
  %s9 = scalar_select 0, %s8, %s6
  $region1: #{tpu_custom_call.1} parent=0
    #allocation2 [shape = 'u8[32768]{0}', space=vmem, size = 0x8000, scoped, tag = 'input window, operand 0']
    #allocation3 [shape = 's32[2]{0}', space=sflag, size = 0x8, scoped, tag = 'scoped memory for tpu_custom_call.1']
    #allocation4 [shape = 's32[2]{0}', space=sflag, size = 0x8, scoped, tag = 'scoped memory for tpu_custom_call.1']
    #allocation5 [shape = 'u8[262144]{0}', space=vmem, size = 0x40000, scoped, tag = 'input window, operand 1, single buffered']
    #allocation6 [shape = 's32[1]{0}', space=sflag, size = 0x4, scoped, tag = 'scoped memory for tpu_custom_call.1']
    #allocation7 [shape = 'u8[2048]{0}', space=vmem, size = 0x800, scoped, tag = 'input window, operand 2, single buffered']
    #allocation8 [shape = 'u8[262144]{0}', space=vmem, size = 0x40000, scoped, tag = 'input window, operand 3, single buffered']
    #allocation9 [shape = 's32[1]{0}', space=sflag, size = 0x4, scoped, tag = 'scoped memory for tpu_custom_call.1']
    #allocation10 [shape = 'u8[32768]{0}', space=vmem, size = 0x8000, scoped, tag = 'output window, operand 0']
    %10 = vsyncpa [#allocation3], 0
    %s11 = scalar_lea.sflag [#allocation3], 1
    %12 = vsyncpa %s11, 0
    %13 = vsyncpa [#allocation6], 0
    %14 = vsyncpa [#allocation9], 0
    %15 = vsyncpa [#allocation4], 0
    %s16 = scalar_lea.sflag [#allocation4], 1
    %17 = vsyncpa %s16, 0
    loop: start=0, step=1, limit=4
    $region2: #{tpu_custom_call.1} parent=1 // loop_pre_header
      _
    $region3: #{tpu_custom_call.1} parent=1 // loop_header
      %s19 = sphi 0, %s23
      %p20 = scmp.ge.s32.totalorder %s19, 4
      %s29 = sphi 0, %s31
      %s32 = sphi 0, %s29
      %s33 = sphi 0, %s32
      %s49 = sphi 0, %s33
      %s53 = sphi 0, %s53
      %s55 = sphi 0, %s53
      %s56 = sphi 0, %s55
      %s70 = sphi 0, %s56
      %s74 = sphi 0, %s74
      %s76 = sphi 0, %s74
      %s77 = sphi 0, %s76
      %s91 = sphi 0, %s77
      %s95 = sphi 0, %s95
      %s97 = sphi 0, %s95
      %s98 = sphi 0, %s97
      %s112 = sphi 0, %s98
      %s116 = sphi 0, %s116
      %s118 = sphi 0, %s116
      %s119 = sphi 0, %s118
      %s133 = sphi 0, %s119
      %s139 = sphi 0, %s141
      %s142 = sphi 0, %s139
      %s143 = sphi 0, %s142
      %s159 = sphi 0, %s143
    $region4: #{tpu_custom_call.1} parent=1 // loop_header_branch
      %22 = sbr.rel (%p20) target = $region8
    $region5: #{tpu_custom_call.1} parent=1 // loop_body
      %s24 = ssub.s32 %s19, 1
      %s25 = ssub.s32 %s19, 2
      %s26 = sadd.s32 %s19, 1
      %s27 = ssub.s32 %s19, %s26
      %p28 = scmp.eq.s32.totalorder %s27, 0
      %s30 = sadd.s32 %s29, 1
      %s31 = scalar_select %p28, %s29, %s30
      %p34 = pneg %p28
      %p35 = scmp.eq.s32.totalorder %s19, 1
      %p36 = por %p34, %p35
      %p37 = scmp.ne.s32.totalorder %s29, %s32
      %p38 = scmp.eq.s32.totalorder %s19, 0
      %p39 = por %p37, %p38
      %p40 = scmp.ne.s32.totalorder %s29, %s32
      %p41 = scmp.eq.s32.totalorder %s24, 1
      %p42 = por %p40, %p41
      %p43 = scmp.ne.s32.totalorder %s32, %s33
      %p44 = scmp.eq.s32.totalorder %s24, 0
      %p45 = por %p43, %p44
      %p46 = scmp.ne.s32.totalorder %s32, %s33
      %p47 = scmp.eq.s32.totalorder %s25, 1
      %p48 = por %p46, %p47
      %p50 = scmp.ne.s32.totalorder %s33, %s49
      %p51 = scmp.eq.s32.totalorder %s25, 0
      %p52 = por %p50, %p51
      %s54 = sadd.s32 %s53, 1
      %p57 = scmp.eq.s32.totalorder %s19, 1
      %p58 = scmp.ne.s32.totalorder %s53, %s55
      %p59 = scmp.eq.s32.totalorder %s19, 0
      %p60 = por %p58, %p59
      %p61 = scmp.ne.s32.totalorder %s53, %s55
      %p62 = scmp.eq.s32.totalorder %s24, 1
      %p63 = por %p61, %p62
      %p64 = scmp.ne.s32.totalorder %s55, %s56
      %p65 = scmp.eq.s32.totalorder %s24, 0
      %p66 = por %p64, %p65
      %p67 = scmp.ne.s32.totalorder %s55, %s56
      %p68 = scmp.eq.s32.totalorder %s25, 1
      %p69 = por %p67, %p68
      %p71 = scmp.ne.s32.totalorder %s56, %s70
      %p72 = scmp.eq.s32.totalorder %s25, 0
      %p73 = por %p71, %p72
      %s75 = sadd.s32 %s74, 1
      %p78 = scmp.eq.s32.totalorder %s19, 1
      %p79 = scmp.ne.s32.totalorder %s74, %s76
      %p80 = scmp.eq.s32.totalorder %s19, 0
      %p81 = por %p79, %p80
      %p82 = scmp.ne.s32.totalorder %s74, %s76
      %p83 = scmp.eq.s32.totalorder %s24, 1
      %p84 = por %p82, %p83
      %p85 = scmp.ne.s32.totalorder %s76, %s77
      %p86 = scmp.eq.s32.totalorder %s24, 0
      %p87 = por %p85, %p86
      %p88 = scmp.ne.s32.totalorder %s76, %s77
      %p89 = scmp.eq.s32.totalorder %s25, 1
      %p90 = por %p88, %p89
      %p92 = scmp.ne.s32.totalorder %s77, %s91
      %p93 = scmp.eq.s32.totalorder %s25, 0
      %p94 = por %p92, %p93
      %s96 = sadd.s32 %s95, 1
      %p99 = scmp.eq.s32.totalorder %s19, 1
      %p100 = scmp.ne.s32.totalorder %s95, %s97
      %p101 = scmp.eq.s32.totalorder %s19, 0
      %p102 = por %p100, %p101
      %p103 = scmp.ne.s32.totalorder %s95, %s97
      %p104 = scmp.eq.s32.totalorder %s24, 1
      %p105 = por %p103, %p104
      %p106 = scmp.ne.s32.totalorder %s97, %s98
      %p107 = scmp.eq.s32.totalorder %s24, 0
      %p108 = por %p106, %p107
      %p109 = scmp.ne.s32.totalorder %s97, %s98
      %p110 = scmp.eq.s32.totalorder %s25, 1
      %p111 = por %p109, %p110
      %p113 = scmp.ne.s32.totalorder %s98, %s112
      %p114 = scmp.eq.s32.totalorder %s25, 0
      %p115 = por %p113, %p114
      %s117 = sadd.s32 %s116, 1
      %p120 = scmp.eq.s32.totalorder %s19, 1
      %p121 = scmp.ne.s32.totalorder %s116, %s118
      %p122 = scmp.eq.s32.totalorder %s19, 0
      %p123 = por %p121, %p122
      %p124 = scmp.ne.s32.totalorder %s116, %s118
      %p125 = scmp.eq.s32.totalorder %s24, 1
      %p126 = por %p124, %p125
      %p127 = scmp.ne.s32.totalorder %s118, %s119
      %p128 = scmp.eq.s32.totalorder %s24, 0
      %p129 = por %p127, %p128
      %p130 = scmp.ne.s32.totalorder %s118, %s119
      %p131 = scmp.eq.s32.totalorder %s25, 1
      %p132 = por %p130, %p131
      %p134 = scmp.ne.s32.totalorder %s119, %s133
      %p135 = scmp.eq.s32.totalorder %s25, 0
      %p136 = por %p134, %p135
      %s137 = ssub.s32 %s19, %s26
      %p138 = scmp.eq.s32.totalorder %s137, 0
      %s140 = sadd.s32 %s139, 1
      %s141 = scalar_select %p138, %s139, %s140
      %p144 = pneg %p138
      %p145 = scmp.eq.s32.totalorder %s19, 1
      %p146 = por %p144, %p145
      %p147 = scmp.ne.s32.totalorder %s139, %s142
      %p148 = scmp.eq.s32.totalorder %s19, 0
      %p149 = por %p147, %p148
      %p150 = scmp.ne.s32.totalorder %s139, %s142
      %p151 = scmp.eq.s32.totalorder %s24, 1
      %p152 = por %p150, %p151
      %p153 = scmp.ne.s32.totalorder %s142, %s143
      %p154 = scmp.eq.s32.totalorder %s24, 0
      %p155 = por %p153, %p154
      %p156 = scmp.ne.s32.totalorder %s142, %s143
      %p157 = scmp.eq.s32.totalorder %s25, 1
      %p158 = por %p156, %p157
      %p160 = scmp.ne.s32.totalorder %s143, %s159
      %p161 = scmp.eq.s32.totalorder %s25, 0
      %p162 = por %p160, %p161
      %p163 = scmp.le.s32.totalorder 1, %s19
      %p164 = scmp.lt.s32.totalorder %s19, 3
      %p165 = pnand %p163, %p164
      %p166 = pneg %p165
      // Predicated region
      $region9: #{tpu_custom_call.1} parent=5 // pred_check
        _
      $region10: #{tpu_custom_call.1} parent=5 // pred_check_branch
        %168 = sbr.rel (%p165) target = $region12
      $region11: #{tpu_custom_call.1} parent=5 // pred_region
        %s169 = ssub.s32 %s19, 1
        // Predicated region
        $region13: #{tpu_custom_call.1} parent=11 // pred_check
          %p170 = pneg %p66
        $region14: #{tpu_custom_call.1} parent=11 // pred_check_branch
          %172 = sbr.rel (%p170) target = $region16
        $region15: #{tpu_custom_call.1} parent=11 // pred_region
          %174 = vsyncadd [#allocation6], 0
          %s175 = sshll.u32 %s1, 4
          %s176 = int_to_ptr.hbm [resolvable:$true] %s175
          %s177 = sshll.u32 [#allocation5], 4
          %s178 = int_to_ptr.vmem [resolvable:$true] %s177
          %183 = dma.hbm_to_vmem [thread:$0]  %s176, 8192, %s178, [#allocation6], 512, 512, 32
        $region16: #{tpu_custom_call.1} parent=11 // pred_fallthru
          _
        // Predicated region
        $region17: #{tpu_custom_call.1} parent=11 // pred_check
          %p184 = pneg %p87
        $region18: #{tpu_custom_call.1} parent=11 // pred_check_branch
          %186 = sbr.rel (%p184) target = $region20
        $region19: #{tpu_custom_call.1} parent=11 // pred_region
          %188 = vsyncadd [#allocation6], 0
          %s190 = sshll.u32 %s2, 4
          %s191 = int_to_ptr.hbm [resolvable:$true] %s190
          %s192 = sshll.u32 [#allocation7], 4
          %s193 = int_to_ptr.vmem [resolvable:$true] %s192
          %195 = dma.hbm_to_vmem [thread:$0]  %s191, 64, %s193, [#allocation6]
        $region20: #{tpu_custom_call.1} parent=11 // pred_fallthru
          _
        // Predicated region
        $region21: #{tpu_custom_call.1} parent=11 // pred_check
          %p196 = pneg %p108
        $region22: #{tpu_custom_call.1} parent=11 // pred_check_branch
          %198 = sbr.rel (%p196) target = $region24
        $region23: #{tpu_custom_call.1} parent=11 // pred_region
          %200 = vsyncadd [#allocation9], 0
          %s201 = sshll.u32 %s3, 4
          %s202 = int_to_ptr.hbm [resolvable:$true] %s201
          %s203 = sshll.u32 [#allocation8], 4
          %s204 = int_to_ptr.vmem [resolvable:$true] %s203
          %209 = dma.hbm_to_vmem [thread:$0]  %s202, 8192, %s204, [#allocation9], 128, 128, 8
        $region24: #{tpu_custom_call.1} parent=11 // pred_fallthru
          _
        // Predicated region
        $region25: #{tpu_custom_call.1} parent=11 // pred_check
          %p210 = pneg %p129
        $region26: #{tpu_custom_call.1} parent=11 // pred_check_branch
          %212 = sbr.rel (%p210) target = $region28
        $region27: #{tpu_custom_call.1} parent=11 // pred_region
          _
        $region28: #{tpu_custom_call.1} parent=11 // pred_fallthru
          _
      $region12: #{tpu_custom_call.1} parent=5 // pred_fallthru
        _
      %p213 = scmp.lt.s32.totalorder %s19, 2
      // Predicated region
      $region29: #{tpu_custom_call.1} parent=5 // pred_check
        %p214 = pneg %p213
      $region30: #{tpu_custom_call.1} parent=5 // pred_check_branch
        %216 = sbr.rel (%p214) target = $region32
      $region31: #{tpu_custom_call.1} parent=5 // pred_region
        // Predicated region
        $region33: #{tpu_custom_call.1} parent=31 // pred_check
          %p217 = pneg %p39
        $region34: #{tpu_custom_call.1} parent=31 // pred_check_branch
          %219 = sbr.rel (%p217) target = $region36
        $region35: #{tpu_custom_call.1} parent=31 // pred_region
          %s220 = sand.u32 %s29, 1
          %s221 = scalar_lea.sflag [#allocation3], %s220
          %s222 = sand.u32 %s29, 1
          %s223 = smul.addr %s222, 32
          %s224 = scalar_lea.vmem [#allocation2], %s223
          %s225 = smul.u32 4, %s19
          %227 = vsyncadd %s221, 0
          %s228 = smul.addr %s225, 8
          %s229 = scalar_lea.hbm %s0, %s228
          %s230 = sshll.u32 %s229, 4
          %s231 = int_to_ptr.hbm [resolvable:$true] %s230
          %s232 = sshll.u32 %s224, 4
          %s233 = int_to_ptr.vmem [resolvable:$true] %s232
          %238 = dma.hbm_to_vmem [thread:$0]  %s231, 512, %s233, %s221, 128, 128, 8
        $region36: #{tpu_custom_call.1} parent=31 // pred_fallthru
          _
      $region32: #{tpu_custom_call.1} parent=5 // pred_fallthru
        _
      %p239 = scmp.le.s32.totalorder 1, %s19
      %p240 = scmp.lt.s32.totalorder %s19, 3
      %p241 = pnand %p239, %p240
      %p242 = pneg %p241
      // Predicated region
      $region37: #{tpu_custom_call.1} parent=5 // pred_check
        _
      $region38: #{tpu_custom_call.1} parent=5 // pred_check_branch
        %244 = sbr.rel (%p241) target = $region40
      $region39: #{tpu_custom_call.1} parent=5 // pred_region
        %s245 = ssub.s32 %s19, 1
        %s246 = sand.u32 %s32, 1
        %s247 = scalar_lea.sflag [#allocation3], %s246
        %s248 = sand.u32 %s32, 1
        %s249 = smul.addr %s248, 32
        %s250 = scalar_lea.vmem [#allocation2], %s249
        // Predicated region
        $region41: #{tpu_custom_call.1} parent=39 // pred_check
          %p251 = pneg %p45
        $region42: #{tpu_custom_call.1} parent=39 // pred_check_branch
          %253 = sbr.rel (%p251) target = $region44
        $region43: #{tpu_custom_call.1} parent=39 // pred_region
          %255 = dma.done %s247, 512
        $region44: #{tpu_custom_call.1} parent=39 // pred_fallthru
          _
        // Predicated region
        $region45: #{tpu_custom_call.1} parent=39 // pred_check
          %p256 = pneg %p66
        $region46: #{tpu_custom_call.1} parent=39 // pred_check_branch
          %258 = sbr.rel (%p256) target = $region48
        $region47: #{tpu_custom_call.1} parent=39 // pred_region
          %260 = dma.done [#allocation6], 8192
        $region48: #{tpu_custom_call.1} parent=39 // pred_fallthru
          _
        // Predicated region
        $region49: #{tpu_custom_call.1} parent=39 // pred_check
          %p261 = pneg %p87
        $region50: #{tpu_custom_call.1} parent=39 // pred_check_branch
          %263 = sbr.rel (%p261) target = $region52
        $region51: #{tpu_custom_call.1} parent=39 // pred_region
          %265 = dma.done [#allocation6], 64
        $region52: #{tpu_custom_call.1} parent=39 // pred_fallthru
          _
        // Predicated region
        $region53: #{tpu_custom_call.1} parent=39 // pred_check
          %p266 = pneg %p108
        $region54: #{tpu_custom_call.1} parent=39 // pred_check_branch
          %268 = sbr.rel (%p266) target = $region56
        $region55: #{tpu_custom_call.1} parent=39 // pred_region
          %270 = dma.done [#allocation9], 8192
        $region56: #{tpu_custom_call.1} parent=39 // pred_fallthru
          _
        %s271 = sand.u32 %s32, 1
        %s272 = scalar_lea.sflag [#allocation3], %s271
        %s273 = sand.u32 %s32, 1
        %s274 = smul.addr %s273, 32
        %s275 = scalar_lea.vmem [#allocation2], %s274
        %p276 = pneg %p45
        %p277 = pneg %p42
        %p278 = pneg %p66
        %p279 = pneg %p63
        %p280 = pneg %p87
        %p281 = pneg %p84
        %p282 = pneg %p108
        %p283 = pneg %p105
        %p284 = pneg %p129
        %p285 = pneg %p126
        %p286 = pneg %p155
        %p287 = pneg %p152
        %s288 = sand.u32 %s142, 1
        %s289 = scalar_lea.sflag [#allocation4], %s288
        %s290 = sand.u32 %s142, 1
        %s291 = smul.addr %s290, 32
        %s292 = scalar_lea.vmem [#allocation10], %s291
        %s293 = smul.u32 4, %s24
        %s294 = smul.u32 4, %s24
        %v295 = vld [vmem:[%s250] sm:$0xff]
        %v296 = vld [vmem:[%s250 + $0x8] sm:$0xff]
        %v297 = vld [vmem:[%s250 + $0x10] sm:$0xff]
        %v298 = vld [vmem:[%s250 + $0x18] sm:$0xff]
        %v299 = vld [vmem:[#allocation5] sm:$0xff]
        %v300 = vld [vmem:[#allocation5 + $0x8] sm:$0xff]
        %v301 = vld [vmem:[#allocation5 + $0x10] sm:$0xff]
        %v302 = vld [vmem:[#allocation5 + $0x18] sm:$0xff]
        %v303 = vld [vmem:[#allocation5 + $0x20] sm:$0xff]
        %v304 = vld [vmem:[#allocation5 + $0x28] sm:$0xff]
        %v305 = vld [vmem:[#allocation5 + $0x30] sm:$0xff]
        %v306 = vld [vmem:[#allocation5 + $0x38] sm:$0xff]
        %v307 = vld [vmem:[#allocation5 + $0x40] sm:$0xff]
        %v308 = vld [vmem:[#allocation5 + $0x48] sm:$0xff]
        %v309 = vld [vmem:[#allocation5 + $0x50] sm:$0xff]
        %v310 = vld [vmem:[#allocation5 + $0x58] sm:$0xff]
        %v311 = vld [vmem:[#allocation5 + $0x60] sm:$0xff]
        %v312 = vld [vmem:[#allocation5 + $0x68] sm:$0xff]
        %v313 = vld [vmem:[#allocation5 + $0x70] sm:$0xff]
        %v314 = vld [vmem:[#allocation5 + $0x78] sm:$0xff]
        %v315 = vld [vmem:[#allocation5 + $0x80] sm:$0xff]
        %v316 = vld [vmem:[#allocation5 + $0x88] sm:$0xff]
        %v317 = vld [vmem:[#allocation5 + $0x90] sm:$0xff]
        %v318 = vld [vmem:[#allocation5 + $0x98] sm:$0xff]
        %v319 = vld [vmem:[#allocation5 + $0xa0] sm:$0xff]
        %v320 = vld [vmem:[#allocation5 + $0xa8] sm:$0xff]
        %v321 = vld [vmem:[#allocation5 + $0xb0] sm:$0xff]
        %v322 = vld [vmem:[#allocation5 + $0xb8] sm:$0xff]
        %v323 = vld [vmem:[#allocation5 + $0xc0] sm:$0xff]
        %v324 = vld [vmem:[#allocation5 + $0xc8] sm:$0xff]
        %v325 = vld [vmem:[#allocation5 + $0xd0] sm:$0xff]
        %v326 = vld [vmem:[#allocation5 + $0xd8] sm:$0xff]
        %v327 = vld [vmem:[#allocation5 + $0xe0] sm:$0xff]
        %v328 = vld [vmem:[#allocation5 + $0xe8] sm:$0xff]
        %v329 = vld [vmem:[#allocation5 + $0xf0] sm:$0xff]
        %v330 = vld [vmem:[#allocation5 + $0xf8] sm:$0xff]
        %v331 = vld [vmem:[#allocation5 + $0x100] sm:$0xff]
        %v332 = vld [vmem:[#allocation5 + $0x108] sm:$0xff]
        %v333 = vld [vmem:[#allocation5 + $0x110] sm:$0xff]
        %v334 = vld [vmem:[#allocation5 + $0x118] sm:$0xff]
        %v335 = vld [vmem:[#allocation5 + $0x120] sm:$0xff]
        %v336 = vld [vmem:[#allocation5 + $0x128] sm:$0xff]
        %v337 = vld [vmem:[#allocation5 + $0x130] sm:$0xff]
        %v338 = vld [vmem:[#allocation5 + $0x138] sm:$0xff]
        %v339 = vld [vmem:[#allocation5 + $0x140] sm:$0xff]
        %v340 = vld [vmem:[#allocation5 + $0x148] sm:$0xff]
        %v341 = vld [vmem:[#allocation5 + $0x150] sm:$0xff]
        %v342 = vld [vmem:[#allocation5 + $0x158] sm:$0xff]
        %v343 = vld [vmem:[#allocation5 + $0x160] sm:$0xff]
        %v344 = vld [vmem:[#allocation5 + $0x168] sm:$0xff]
        %v345 = vld [vmem:[#allocation5 + $0x170] sm:$0xff]
        %v346 = vld [vmem:[#allocation5 + $0x178] sm:$0xff]
        %v347 = vld [vmem:[#allocation5 + $0x180] sm:$0xff]
        %v348 = vld [vmem:[#allocation5 + $0x188] sm:$0xff]
        %v349 = vld [vmem:[#allocation5 + $0x190] sm:$0xff]
        %v350 = vld [vmem:[#allocation5 + $0x198] sm:$0xff]
        %v351 = vld [vmem:[#allocation5 + $0x1a0] sm:$0xff]
        %v352 = vld [vmem:[#allocation5 + $0x1a8] sm:$0xff]
        %v353 = vld [vmem:[#allocation5 + $0x1b0] sm:$0xff]
        %v354 = vld [vmem:[#allocation5 + $0x1b8] sm:$0xff]
        %v355 = vld [vmem:[#allocation5 + $0x1c0] sm:$0xff]
        %v356 = vld [vmem:[#allocation5 + $0x1c8] sm:$0xff]
        %v357 = vld [vmem:[#allocation5 + $0x1d0] sm:$0xff]
        %v358 = vld [vmem:[#allocation5 + $0x1d8] sm:$0xff]
        %v359 = vld [vmem:[#allocation5 + $0x1e0] sm:$0xff]
        %v360 = vld [vmem:[#allocation5 + $0x1e8] sm:$0xff]
        %v361 = vld [vmem:[#allocation5 + $0x1f0] sm:$0xff]
        %v362 = vld [vmem:[#allocation5 + $0x1f8] sm:$0xff]
        %v363 = vld [vmem:[#allocation7] sm:$0xf]
        %v365 = vperm.slane %v363, 0
        %v366 = vperm.slane %v363, 1
        %v367 = vperm.slane %v363, 2
        %v368 = vperm.slane %v363, 3
        %373 = vmatpush.msra.mxu0 %v359
        %374 = vmatpush.msra.mxu0 %v355
        %375 = vmatpush.msra.mxu0 %v351
        %376 = vmatpush.msra.mxu0 %v347
        %377 = vmatpush.msra.mxu0 %v343
        %378 = vmatpush.msra.mxu0 %v339
        %379 = vmatpush.msra.mxu0 %v335
        %380 = vmatpush.msra.mxu0 %v331
        %381 = vmatpush.msra.mxu0 %v327
        %382 = vmatpush.msra.mxu0 %v323
        %383 = vmatpush.msra.mxu0 %v319
        %384 = vmatpush.msra.mxu0 %v315
        %385 = vmatpush.msra.mxu0 %v311
        %386 = vmatpush.msra.mxu0 %v307
        %387 = vmatpush.msra.mxu0 %v303
        %388 = vmatpush.msra.mxu0 %v299
        %389 = vmatmul.f32.gmra.mxu0 %v295
        %v390 = vpop.f32.mrf.mxu0
        %v391 = vadd.f32 %v365, %v390
        %392 = vmatmul.f32.gmra.mxu0 %v296
        %v393 = vpop.f32.mrf.mxu0
        %v394 = vadd.f32 %v365, %v393
        %395 = vmatmul.f32.gmra.mxu0 %v297
        %v396 = vpop.f32.mrf.mxu0
        %v397 = vadd.f32 %v365, %v396
        %398 = vmatmul.f32.gmra.mxu0 %v298
        %v399 = vpop.f32.mrf.mxu0
        %v400 = vadd.f32 %v365, %v399
        %401 = vdwg.mxu0
        %402 = vmatpush.msra.mxu0 %v360
        %403 = vmatpush.msra.mxu0 %v356
        %404 = vmatpush.msra.mxu0 %v352
        %405 = vmatpush.msra.mxu0 %v348
        %406 = vmatpush.msra.mxu0 %v344
        %407 = vmatpush.msra.mxu0 %v340
        %408 = vmatpush.msra.mxu0 %v336
        %409 = vmatpush.msra.mxu0 %v332
        %410 = vmatpush.msra.mxu0 %v328
        %411 = vmatpush.msra.mxu0 %v324
        %412 = vmatpush.msra.mxu0 %v320
        %413 = vmatpush.msra.mxu0 %v316
        %414 = vmatpush.msra.mxu0 %v312
        %415 = vmatpush.msra.mxu0 %v308
        %416 = vmatpush.msra.mxu0 %v304
        %417 = vmatpush.msra.mxu0 %v300
        %418 = vmatmul.f32.gmra.mxu0 %v295
        %v419 = vpop.f32.mrf.mxu0
        %v420 = vadd.f32 %v366, %v419
        %421 = vmatmul.f32.gmra.mxu0 %v296
        %v422 = vpop.f32.mrf.mxu0
        %v423 = vadd.f32 %v366, %v422
        %424 = vmatmul.f32.gmra.mxu0 %v297
        %v425 = vpop.f32.mrf.mxu0
        %v426 = vadd.f32 %v366, %v425
        %427 = vmatmul.f32.gmra.mxu0 %v298
        %v428 = vpop.f32.mrf.mxu0
        %v429 = vadd.f32 %v366, %v428
        %430 = vdwg.mxu0
        %431 = vmatpush.msra.mxu0 %v361
        %432 = vmatpush.msra.mxu0 %v357
        %433 = vmatpush.msra.mxu0 %v353
        %434 = vmatpush.msra.mxu0 %v349
        %435 = vmatpush.msra.mxu0 %v345
        %436 = vmatpush.msra.mxu0 %v341
        %437 = vmatpush.msra.mxu0 %v337
        %438 = vmatpush.msra.mxu0 %v333
        %439 = vmatpush.msra.mxu0 %v329
        %440 = vmatpush.msra.mxu0 %v325
        %441 = vmatpush.msra.mxu0 %v321
        %442 = vmatpush.msra.mxu0 %v317
        %443 = vmatpush.msra.mxu0 %v313
        %444 = vmatpush.msra.mxu0 %v309
        %445 = vmatpush.msra.mxu0 %v305
        %446 = vmatpush.msra.mxu0 %v301
        %447 = vmatmul.f32.gmra.mxu0 %v295
        %v448 = vpop.f32.mrf.mxu0
        %v449 = vadd.f32 %v367, %v448
        %450 = vmatmul.f32.gmra.mxu0 %v296
        %v451 = vpop.f32.mrf.mxu0
        %v452 = vadd.f32 %v367, %v451
        %453 = vmatmul.f32.gmra.mxu0 %v297
        %v454 = vpop.f32.mrf.mxu0
        %v455 = vadd.f32 %v367, %v454
        %456 = vmatmul.f32.gmra.mxu0 %v298
        %v457 = vpop.f32.mrf.mxu0
        %v458 = vadd.f32 %v367, %v457
        %459 = vdwg.mxu0
        %460 = vmatpush.msra.mxu0 %v362
        %461 = vmatpush.msra.mxu0 %v358
        %462 = vmatpush.msra.mxu0 %v354
        %463 = vmatpush.msra.mxu0 %v350
        %464 = vmatpush.msra.mxu0 %v346
        %465 = vmatpush.msra.mxu0 %v342
        %466 = vmatpush.msra.mxu0 %v338
        %467 = vmatpush.msra.mxu0 %v334
        %468 = vmatpush.msra.mxu0 %v330
        %469 = vmatpush.msra.mxu0 %v326
        %470 = vmatpush.msra.mxu0 %v322
        %471 = vmatpush.msra.mxu0 %v318
        %472 = vmatpush.msra.mxu0 %v314
        %473 = vmatpush.msra.mxu0 %v310
        %474 = vmatpush.msra.mxu0 %v306
        %475 = vmatpush.msra.mxu0 %v302
        %476 = vmatmul.f32.gmra.mxu0 %v295
        %v477 = vpop.f32.mrf.mxu0
        %v478 = vadd.f32 %v368, %v477
        %479 = vmatmul.f32.gmra.mxu0 %v296
        %v480 = vpop.f32.mrf.mxu0
        %v481 = vadd.f32 %v368, %v480
        %482 = vmatmul.f32.gmra.mxu0 %v297
        %v483 = vpop.f32.mrf.mxu0
        %v484 = vadd.f32 %v368, %v483
        %485 = vmatmul.f32.gmra.mxu0 %v298
        %v486 = vpop.f32.mrf.mxu0
        %v487 = vadd.f32 %v368, %v486
        %488 = vdwg.mxu0
        %v489 = vmul.f32 %v391, 0.5
        %v490 = vmul.f32 %v420, 0.5
        %v491 = vmul.f32 %v449, 0.5
        %v492 = vmul.f32 %v478, 0.5
        %v493 = vmul.f32 %v394, 0.5
        %v494 = vmul.f32 %v423, 0.5
        %v495 = vmul.f32 %v452, 0.5
        %v496 = vmul.f32 %v481, 0.5
        %v497 = vmul.f32 %v397, 0.5
        %v498 = vmul.f32 %v426, 0.5
        %v499 = vmul.f32 %v455, 0.5
        %v500 = vmul.f32 %v484, 0.5
        %v501 = vmul.f32 %v400, 0.5
        %v502 = vmul.f32 %v429, 0.5
        %v503 = vmul.f32 %v458, 0.5
        %v504 = vmul.f32 %v487, 0.5
        %v505 = vmul.f32 %v391, %v391
        %v506 = vmul.f32 %v420, %v420
        %v507 = vmul.f32 %v449, %v449
        %v508 = vmul.f32 %v478, %v478
        %v509 = vmul.f32 %v394, %v394
        %v510 = vmul.f32 %v423, %v423
        %v511 = vmul.f32 %v452, %v452
        %v512 = vmul.f32 %v481, %v481
        %v513 = vmul.f32 %v397, %v397
        %v514 = vmul.f32 %v426, %v426
        %v515 = vmul.f32 %v455, %v455
        %v516 = vmul.f32 %v484, %v484
        %v517 = vmul.f32 %v400, %v400
        %v518 = vmul.f32 %v429, %v429
        %v519 = vmul.f32 %v458, %v458
        %v520 = vmul.f32 %v487, %v487
        %v521 = vmul.f32 %v505, %v391
        %v522 = vmul.f32 %v506, %v420
        %v523 = vmul.f32 %v507, %v449
        %v524 = vmul.f32 %v508, %v478
        %v525 = vmul.f32 %v509, %v394
        %v526 = vmul.f32 %v510, %v423
        %v527 = vmul.f32 %v511, %v452
        %v528 = vmul.f32 %v512, %v481
        %v529 = vmul.f32 %v513, %v397
        %v530 = vmul.f32 %v514, %v426
        %v531 = vmul.f32 %v515, %v455
        %v532 = vmul.f32 %v516, %v484
        %v533 = vmul.f32 %v517, %v400
        %v534 = vmul.f32 %v518, %v429
        %v535 = vmul.f32 %v519, %v458
        %v536 = vmul.f32 %v520, %v487
        %v537 = vmul.f32 %v521, 0.044715
        %v538 = vmul.f32 %v522, 0.044715
        %v539 = vmul.f32 %v523, 0.044715
        %v540 = vmul.f32 %v524, 0.044715
        %v541 = vmul.f32 %v525, 0.044715
        %v542 = vmul.f32 %v526, 0.044715
        %v543 = vmul.f32 %v527, 0.044715
        %v544 = vmul.f32 %v528, 0.044715
        %v545 = vmul.f32 %v529, 0.044715
        %v546 = vmul.f32 %v530, 0.044715
        %v547 = vmul.f32 %v531, 0.044715
        %v548 = vmul.f32 %v532, 0.044715
        %v549 = vmul.f32 %v533, 0.044715
        %v550 = vmul.f32 %v534, 0.044715
        %v551 = vmul.f32 %v535, 0.044715
        %v552 = vmul.f32 %v536, 0.044715
        %v553 = vadd.f32 %v391, %v537
        %v554 = vadd.f32 %v420, %v538
        %v555 = vadd.f32 %v449, %v539
        %v556 = vadd.f32 %v478, %v540
        %v557 = vadd.f32 %v394, %v541
        %v558 = vadd.f32 %v423, %v542
        %v559 = vadd.f32 %v452, %v543
        %v560 = vadd.f32 %v481, %v544
        %v561 = vadd.f32 %v397, %v545
        %v562 = vadd.f32 %v426, %v546
        %v563 = vadd.f32 %v455, %v547
        %v564 = vadd.f32 %v484, %v548
        %v565 = vadd.f32 %v400, %v549
        %v566 = vadd.f32 %v429, %v550
        %v567 = vadd.f32 %v458, %v551
        %v568 = vadd.f32 %v487, %v552
        %v569 = vmul.f32 %v553, 0.7978846
        %v570 = vmul.f32 %v554, 0.7978846
        %v571 = vmul.f32 %v555, 0.7978846
        %v572 = vmul.f32 %v556, 0.7978846
        %v573 = vmul.f32 %v557, 0.7978846
        %v574 = vmul.f32 %v558, 0.7978846
        %v575 = vmul.f32 %v559, 0.7978846
        %v576 = vmul.f32 %v560, 0.7978846
        %v577 = vmul.f32 %v561, 0.7978846
        %v578 = vmul.f32 %v562, 0.7978846
        %v579 = vmul.f32 %v563, 0.7978846
        %v580 = vmul.f32 %v564, 0.7978846
        %v581 = vmul.f32 %v565, 0.7978846
        %v582 = vmul.f32 %v566, 0.7978846
        %v583 = vmul.f32 %v567, 0.7978846
        %v584 = vmul.f32 %v568, 0.7978846
        %v585 = vtanh.pop %v569
        %v586 = vtanh.pop %v570
        %v587 = vtanh.pop %v571
        %v588 = vtanh.pop %v572
        %v589 = vtanh.pop %v573
        %v590 = vtanh.pop %v574
        %v591 = vtanh.pop %v575
        %v592 = vtanh.pop %v576
        %v593 = vtanh.pop %v577
        %v594 = vtanh.pop %v578
        %v595 = vtanh.pop %v579
        %v596 = vtanh.pop %v580
        %v597 = vtanh.pop %v581
        %v598 = vtanh.pop %v582
        %v599 = vtanh.pop %v583
        %v600 = vtanh.pop %v584
        %v601 = vadd.f32 %v585, 1.0
        %v602 = vadd.f32 %v586, 1.0
        %v603 = vadd.f32 %v587, 1.0
        %v604 = vadd.f32 %v588, 1.0
        %v605 = vadd.f32 %v589, 1.0
        %v606 = vadd.f32 %v590, 1.0
        %v607 = vadd.f32 %v591, 1.0
        %v608 = vadd.f32 %v592, 1.0
        %v609 = vadd.f32 %v593, 1.0
        %v610 = vadd.f32 %v594, 1.0
        %v611 = vadd.f32 %v595, 1.0
        %v612 = vadd.f32 %v596, 1.0
        %v613 = vadd.f32 %v597, 1.0
        %v614 = vadd.f32 %v598, 1.0
        %v615 = vadd.f32 %v599, 1.0
        %v616 = vadd.f32 %v600, 1.0
        %v617 = vmul.f32 %v489, %v601
        %v618 = vmul.f32 %v490, %v602
        %v619 = vmul.f32 %v491, %v603
        %v620 = vmul.f32 %v492, %v604
        %v621 = vmul.f32 %v493, %v605
        %v622 = vmul.f32 %v494, %v606
        %v623 = vmul.f32 %v495, %v607
        %v624 = vmul.f32 %v496, %v608
        %v625 = vmul.f32 %v497, %v609
        %v626 = vmul.f32 %v498, %v610
        %v627 = vmul.f32 %v499, %v611
        %v628 = vmul.f32 %v500, %v612
        %v629 = vmul.f32 %v501, %v613
        %v630 = vmul.f32 %v502, %v614
        %v631 = vmul.f32 %v503, %v615
        %v632 = vmul.f32 %v504, %v616
        %v633 = vld [vmem:[#allocation8] sm:$0xff]
        %v634 = vld [vmem:[#allocation8 + $0x8] sm:$0xff]
        %v635 = vld [vmem:[#allocation8 + $0x10] sm:$0xff]
        %v636 = vld [vmem:[#allocation8 + $0x18] sm:$0xff]
        %v637 = vld [vmem:[#allocation8 + $0x20] sm:$0xff]
        %v638 = vld [vmem:[#allocation8 + $0x28] sm:$0xff]
        %v639 = vld [vmem:[#allocation8 + $0x30] sm:$0xff]
        %v640 = vld [vmem:[#allocation8 + $0x38] sm:$0xff]
        %v641 = vld [vmem:[#allocation8 + $0x40] sm:$0xff]
        %v642 = vld [vmem:[#allocation8 + $0x48] sm:$0xff]
        %v643 = vld [vmem:[#allocation8 + $0x50] sm:$0xff]
        %v644 = vld [vmem:[#allocation8 + $0x58] sm:$0xff]
        %v645 = vld [vmem:[#allocation8 + $0x60] sm:$0xff]
        %v646 = vld [vmem:[#allocation8 + $0x68] sm:$0xff]
        %v647 = vld [vmem:[#allocation8 + $0x70] sm:$0xff]
        %v648 = vld [vmem:[#allocation8 + $0x78] sm:$0xff]
        %v649 = vld [vmem:[#allocation8 + $0x80] sm:$0xff]
        %v650 = vld [vmem:[#allocation8 + $0x88] sm:$0xff]
        %v651 = vld [vmem:[#allocation8 + $0x90] sm:$0xff]
        %v652 = vld [vmem:[#allocation8 + $0x98] sm:$0xff]
        %v653 = vld [vmem:[#allocation8 + $0xa0] sm:$0xff]
        %v654 = vld [vmem:[#allocation8 + $0xa8] sm:$0xff]
        %v655 = vld [vmem:[#allocation8 + $0xb0] sm:$0xff]
        %v656 = vld [vmem:[#allocation8 + $0xb8] sm:$0xff]
        %v657 = vld [vmem:[#allocation8 + $0xc0] sm:$0xff]
        %v658 = vld [vmem:[#allocation8 + $0xc8] sm:$0xff]
        %v659 = vld [vmem:[#allocation8 + $0xd0] sm:$0xff]
        %v660 = vld [vmem:[#allocation8 + $0xd8] sm:$0xff]
        %v661 = vld [vmem:[#allocation8 + $0xe0] sm:$0xff]
        %v662 = vld [vmem:[#allocation8 + $0xe8] sm:$0xff]
        %v663 = vld [vmem:[#allocation8 + $0xf0] sm:$0xff]
        %v664 = vld [vmem:[#allocation8 + $0xf8] sm:$0xff]
        %v665 = vld [vmem:[#allocation8 + $0x100] sm:$0xff]
        %v666 = vld [vmem:[#allocation8 + $0x108] sm:$0xff]
        %v667 = vld [vmem:[#allocation8 + $0x110] sm:$0xff]
        %v668 = vld [vmem:[#allocation8 + $0x118] sm:$0xff]
        %v669 = vld [vmem:[#allocation8 + $0x120] sm:$0xff]
        %v670 = vld [vmem:[#allocation8 + $0x128] sm:$0xff]
        %v671 = vld [vmem:[#allocation8 + $0x130] sm:$0xff]
        %v672 = vld [vmem:[#allocation8 + $0x138] sm:$0xff]
        %v673 = vld [vmem:[#allocation8 + $0x140] sm:$0xff]
        %v674 = vld [vmem:[#allocation8 + $0x148] sm:$0xff]
        %v675 = vld [vmem:[#allocation8 + $0x150] sm:$0xff]
        %v676 = vld [vmem:[#allocation8 + $0x158] sm:$0xff]
        %v677 = vld [vmem:[#allocation8 + $0x160] sm:$0xff]
        %v678 = vld [vmem:[#allocation8 + $0x168] sm:$0xff]
        %v679 = vld [vmem:[#allocation8 + $0x170] sm:$0xff]
        %v680 = vld [vmem:[#allocation8 + $0x178] sm:$0xff]
        %v681 = vld [vmem:[#allocation8 + $0x180] sm:$0xff]
        %v682 = vld [vmem:[#allocation8 + $0x188] sm:$0xff]
        %v683 = vld [vmem:[#allocation8 + $0x190] sm:$0xff]
        %v684 = vld [vmem:[#allocation8 + $0x198] sm:$0xff]
        %v685 = vld [vmem:[#allocation8 + $0x1a0] sm:$0xff]
        %v686 = vld [vmem:[#allocation8 + $0x1a8] sm:$0xff]
        %v687 = vld [vmem:[#allocation8 + $0x1b0] sm:$0xff]
        %v688 = vld [vmem:[#allocation8 + $0x1b8] sm:$0xff]
        %v689 = vld [vmem:[#allocation8 + $0x1c0] sm:$0xff]
        %v690 = vld [vmem:[#allocation8 + $0x1c8] sm:$0xff]
        %v691 = vld [vmem:[#allocation8 + $0x1d0] sm:$0xff]
        %v692 = vld [vmem:[#allocation8 + $0x1d8] sm:$0xff]
        %v693 = vld [vmem:[#allocation8 + $0x1e0] sm:$0xff]
        %v694 = vld [vmem:[#allocation8 + $0x1e8] sm:$0xff]
        %v695 = vld [vmem:[#allocation8 + $0x1f0] sm:$0xff]
        %v696 = vld [vmem:[#allocation8 + $0x1f8] sm:$0xff]
        %v697 = vld [vmem:[%s4] sm:$0x1]
        %v699 = vperm.slane %v697, 0
        %701 = vmatpush.msra.mxu0 %v648
        %702 = vmatpush.msra.mxu0 %v647
        %703 = vmatpush.msra.mxu0 %v646
        %704 = vmatpush.msra.mxu0 %v645
        %705 = vmatpush.msra.mxu0 %v644
        %706 = vmatpush.msra.mxu0 %v643
        %707 = vmatpush.msra.mxu0 %v642
        %708 = vmatpush.msra.mxu0 %v641
        %709 = vmatpush.msra.mxu0 %v640
        %710 = vmatpush.msra.mxu0 %v639
        %711 = vmatpush.msra.mxu0 %v638
        %712 = vmatpush.msra.mxu0 %v637
        %713 = vmatpush.msra.mxu0 %v636
        %714 = vmatpush.msra.mxu0 %v635
        %715 = vmatpush.msra.mxu0 %v634
        %716 = vmatpush.msra.mxu0 %v633
        %717 = vmatmul.f32.gmra.mxu0 %v617
        %v718 = vpop.f32.mrf.mxu0
        %v719 = vadd.f32 %v699, %v718
        %720 = vmatmul.f32.gmra.mxu0 %v621
        %v721 = vpop.f32.mrf.mxu0
        %v722 = vadd.f32 %v699, %v721
        %723 = vmatmul.f32.gmra.mxu0 %v625
        %v724 = vpop.f32.mrf.mxu0
        %v725 = vadd.f32 %v699, %v724
        %726 = vmatmul.f32.gmra.mxu0 %v629
        %v727 = vpop.f32.mrf.mxu0
        %v728 = vadd.f32 %v699, %v727
        %729 = vdwg.mxu0
        %730 = vmatpush.msra.mxu0 %v664
        %731 = vmatpush.msra.mxu0 %v663
        %732 = vmatpush.msra.mxu0 %v662
        %733 = vmatpush.msra.mxu0 %v661
        %734 = vmatpush.msra.mxu0 %v660
        %735 = vmatpush.msra.mxu0 %v659
        %736 = vmatpush.msra.mxu0 %v658
        %737 = vmatpush.msra.mxu0 %v657
        %738 = vmatpush.msra.mxu0 %v656
        %739 = vmatpush.msra.mxu0 %v655
        %740 = vmatpush.msra.mxu0 %v654
        %741 = vmatpush.msra.mxu0 %v653
        %742 = vmatpush.msra.mxu0 %v652
        %743 = vmatpush.msra.mxu0 %v651
        %744 = vmatpush.msra.mxu0 %v650
        %745 = vmatpush.msra.mxu0 %v649
        %746 = vmatmul.f32.gmra.mxu0 %v618
        %v747 = vpop.f32.mrf.mxu0
        %v748 = vadd.f32 %v719, %v747
        %749 = vmatmul.f32.gmra.mxu0 %v622
        %v750 = vpop.f32.mrf.mxu0
        %v751 = vadd.f32 %v722, %v750
        %752 = vmatmul.f32.gmra.mxu0 %v626
        %v753 = vpop.f32.mrf.mxu0
        %v754 = vadd.f32 %v725, %v753
        %755 = vmatmul.f32.gmra.mxu0 %v630
        %v756 = vpop.f32.mrf.mxu0
        %v757 = vadd.f32 %v728, %v756
        %758 = vdwg.mxu0
        %759 = vmatpush.msra.mxu0 %v680
        %760 = vmatpush.msra.mxu0 %v679
        %761 = vmatpush.msra.mxu0 %v678
        %762 = vmatpush.msra.mxu0 %v677
        %763 = vmatpush.msra.mxu0 %v676
        %764 = vmatpush.msra.mxu0 %v675
        %765 = vmatpush.msra.mxu0 %v674
        %766 = vmatpush.msra.mxu0 %v673
        %767 = vmatpush.msra.mxu0 %v672
        %768 = vmatpush.msra.mxu0 %v671
        %769 = vmatpush.msra.mxu0 %v670
        %770 = vmatpush.msra.mxu0 %v669
        %771 = vmatpush.msra.mxu0 %v668
        %772 = vmatpush.msra.mxu0 %v667
        %773 = vmatpush.msra.mxu0 %v666
        %774 = vmatpush.msra.mxu0 %v665
        %775 = vmatmul.f32.gmra.mxu0 %v619
        %v776 = vpop.f32.mrf.mxu0
        %v777 = vadd.f32 %v748, %v776
        %778 = vmatmul.f32.gmra.mxu0 %v623
        %v779 = vpop.f32.mrf.mxu0
        %v780 = vadd.f32 %v751, %v779
        %781 = vmatmul.f32.gmra.mxu0 %v627
        %v782 = vpop.f32.mrf.mxu0
        %v783 = vadd.f32 %v754, %v782
        %784 = vmatmul.f32.gmra.mxu0 %v631
        %v785 = vpop.f32.mrf.mxu0
        %v786 = vadd.f32 %v757, %v785
        %787 = vdwg.mxu0
        %788 = vmatpush.msra.mxu0 %v696
        %789 = vmatpush.msra.mxu0 %v695
        %790 = vmatpush.msra.mxu0 %v694
        %791 = vmatpush.msra.mxu0 %v693
        %792 = vmatpush.msra.mxu0 %v692
        %793 = vmatpush.msra.mxu0 %v691
        %794 = vmatpush.msra.mxu0 %v690
        %795 = vmatpush.msra.mxu0 %v689
        %796 = vmatpush.msra.mxu0 %v688
        %797 = vmatpush.msra.mxu0 %v687
        %798 = vmatpush.msra.mxu0 %v686
        %799 = vmatpush.msra.mxu0 %v685
        %800 = vmatpush.msra.mxu0 %v684
        %801 = vmatpush.msra.mxu0 %v683
        %802 = vmatpush.msra.mxu0 %v682
        %803 = vmatpush.msra.mxu0 %v681
        %804 = vmatmul.f32.gmra.mxu0 %v620
        %v805 = vpop.f32.mrf.mxu0
        %v806 = vadd.f32 %v777, %v805
        %807 = vmatmul.f32.gmra.mxu0 %v624
        %v808 = vpop.f32.mrf.mxu0
        %v809 = vadd.f32 %v780, %v808
        %810 = vmatmul.f32.gmra.mxu0 %v628
        %v811 = vpop.f32.mrf.mxu0
        %v812 = vadd.f32 %v783, %v811
        %813 = vmatmul.f32.gmra.mxu0 %v632
        %v814 = vpop.f32.mrf.mxu0
        %v815 = vadd.f32 %v786, %v814
        %816 = vdwg.mxu0
        %817 = vst [vmem:[%s292] sm:$0xff] %v806
        %818 = vst [vmem:[%s292 + $0x8] sm:$0xff] %v809
        %819 = vst [vmem:[%s292 + $0x10] sm:$0xff] %v812
        %820 = vst [vmem:[%s292 + $0x18] sm:$0xff] %v815
        %s821 = sand.u32 %s142, 1
        %s822 = scalar_lea.sflag [#allocation4], %s821
        %s823 = sand.u32 %s142, 1
        %s824 = smul.addr %s823, 32
        %s825 = scalar_lea.vmem [#allocation10], %s824
        // Predicated region
        $region57: #{tpu_custom_call.1} parent=39 // pred_check
          %p826 = pneg %p152
        $region58: #{tpu_custom_call.1} parent=39 // pred_check_branch
          %828 = sbr.rel (%p826) target = $region60
        $region59: #{tpu_custom_call.1} parent=39 // pred_region
          %s829 = smul.u32 4, %s24
          %831 = vsyncadd %s822, 0
          %s832 = smul.addr %s829, 8
          %s833 = scalar_lea.hbm %s5, %s832
          %s834 = sshll.u32 %s825, 4
          %s835 = int_to_ptr.vmem [resolvable:$true] %s834
          %s836 = sshll.u32 %s833, 4
          %s837 = int_to_ptr.hbm [resolvable:$true] %s836
          %842 = dma.vmem_to_hbm [thread:$0]  %s835, 512, %s837, %s822, 128, 128, 8
        $region60: #{tpu_custom_call.1} parent=39 // pred_fallthru
          _
      $region40: #{tpu_custom_call.1} parent=5 // pred_fallthru
        _
      %p843 = scmp.le.s32.totalorder 2, %s19
      // Predicated region
      $region61: #{tpu_custom_call.1} parent=5 // pred_check
        %p844 = pneg %p843
      $region62: #{tpu_custom_call.1} parent=5 // pred_check_branch
        %846 = sbr.rel (%p844) target = $region64
      $region63: #{tpu_custom_call.1} parent=5 // pred_region
        %s847 = ssub.s32 %s19, 2
        // Predicated region
        $region65: #{tpu_custom_call.1} parent=63 // pred_check
          %p848 = pneg %p158
        $region66: #{tpu_custom_call.1} parent=63 // pred_check_branch
          %850 = sbr.rel (%p848) target = $region68
        $region67: #{tpu_custom_call.1} parent=63 // pred_region
          %s851 = sand.u32 %s143, 1
          %s852 = scalar_lea.sflag [#allocation4], %s851
          %s853 = sand.u32 %s143, 1
          %s854 = smul.addr %s853, 32
          %s855 = scalar_lea.vmem [#allocation10], %s854
          %857 = dma.done %s852, 512
        $region68: #{tpu_custom_call.1} parent=63 // pred_fallthru
          _
      $region64: #{tpu_custom_call.1} parent=5 // pred_fallthru
        _
    $region6: #{tpu_custom_call.1} parent=1 // loop_footer
      %s23 = sadd.s32 1, %s19
    $region7: #{tpu_custom_call.1} parent=1 // loop_footer_branch
      %18 = sbr.rel target = $region3
    $region8: #{tpu_custom_call.1} parent=1 // loop_exit
      _
    %858 = vsyncpa [#allocation3], 1
    %s859 = scalar_lea.sflag [#allocation3], 1
    %860 = vsyncpa %s859, 1
    %861 = vsyncpa [#allocation6], 1
    %862 = vsyncpa [#allocation9], 1
    %863 = vsyncpa [#allocation4], 1
    %s864 = scalar_lea.sflag [#allocation4], 1
    %865 = vsyncpa %s864, 1

// kernel: tpu_custom_call.1
$region0: #{tpu_custom_call.1}
  #allocation0 [shape = 'u32[]', space=smem, size = 0x4, offset = 0x4, fixed_abs, tag = 'smem constant byte address 0x4 - core index']
  #allocation1 [shape = 'u32[72,128]{1,0:T(1,128)}', space=vmem, size = 0x9000, scoped, tag = 'internal scratch']
  %s0 = inlined_call_operand.hbm [shape: f32[64,128], index: 0, kind: input, shape index: {}]
  %s1 = inlined_call_operand.hbm [shape: f32[128,512], index: 1, kind: input, shape index: {}]
  %s2 = inlined_call_operand.hbm [shape: f32[1,512], index: 2, kind: input, shape index: {}]
  %s3 = inlined_call_operand.hbm [shape: f32[512,128], index: 3, kind: input, shape index: {}]
  %s4 = inlined_call_operand.vmem [shape: f32[1,128], index: 4, kind: input, shape index: {}]
  %s5 = inlined_call_operand.hbm [shape: f32[64,128], index: 5, kind: output, shape index: {}]
  %s6 = sld [smem:[#allocation0]]
  $region69: #{tpu_custom_call.1} parent=0
    _
  %s8 = ssub.s32 1, %s6
  %s9 = scalar_select 0, %s8, %s6
  $region1: #{tpu_custom_call.1} parent=0
    #allocation2 [shape = 'u8[32768]{0}', space=vmem, size = 0x8000, scoped, tag = 'input window, operand 0']
    #allocation3 [shape = 's32[2]{0}', space=sflag, size = 0x8, scoped, tag = 'scoped memory for tpu_custom_call.1']
    #allocation4 [shape = 's32[2]{0}', space=sflag, size = 0x8, scoped, tag = 'scoped memory for tpu_custom_call.1']
    #allocation5 [shape = 'u8[262144]{0}', space=vmem, size = 0x40000, scoped, tag = 'input window, operand 1, single buffered']
    #allocation6 [shape = 's32[1]{0}', space=sflag, size = 0x4, scoped, tag = 'scoped memory for tpu_custom_call.1']
    #allocation7 [shape = 'u8[2048]{0}', space=vmem, size = 0x800, scoped, tag = 'input window, operand 2, single buffered']
    #allocation8 [shape = 'u8[262144]{0}', space=vmem, size = 0x40000, scoped, tag = 'input window, operand 3, single buffered']
    #allocation9 [shape = 's32[1]{0}', space=sflag, size = 0x4, scoped, tag = 'scoped memory for tpu_custom_call.1']
    #allocation10 [shape = 'u8[32768]{0}', space=vmem, size = 0x8000, scoped, tag = 'output window, operand 0']
    %10 = vsyncpa [#allocation3], 0
    %s11 = scalar_lea.sflag [#allocation3], 1
    %12 = vsyncpa %s11, 0
    %13 = vsyncpa [#allocation6], 0
    %14 = vsyncpa [#allocation9], 0
    %15 = vsyncpa [#allocation4], 0
    %s16 = scalar_lea.sflag [#allocation4], 1
    %17 = vsyncpa %s16, 0
    loop: start=0, step=1, limit=4
    $region2: #{tpu_custom_call.1} parent=1 // loop_pre_header
      _
    $region3: #{tpu_custom_call.1} parent=1 // loop_header
      %s19 = sphi 0, %s23
      %p20 = scmp.ge.s32.totalorder %s19, 4
      %s29 = sphi 0, %s31
      %s32 = sphi 0, %s29
      %s33 = sphi 0, %s32
      %s49 = sphi 0, %s33
      %s53 = sphi 0, %s53
      %s55 = sphi 0, %s53
      %s56 = sphi 0, %s55
      %s70 = sphi 0, %s56
      %s74 = sphi 0, %s74
      %s76 = sphi 0, %s74
      %s77 = sphi 0, %s76
      %s91 = sphi 0, %s77
      %s95 = sphi 0, %s95
      %s97 = sphi 0, %s95
      %s98 = sphi 0, %s97
      %s112 = sphi 0, %s98
      %s116 = sphi 0, %s116
      %s118 = sphi 0, %s116
      %s119 = sphi 0, %s118
      %s133 = sphi 0, %s119
      %s139 = sphi 0, %s141
      %s142 = sphi 0, %s139
      %s143 = sphi 0, %s142
      %s159 = sphi 0, %s143
    $region4: #{tpu_custom_call.1} parent=1 // loop_header_branch
      %22 = sbr.rel (%p20) target = $region8
    $region5: #{tpu_custom_call.1} parent=1 // loop_body
      %s24 = ssub.s32 %s19, 1
      %s25 = ssub.s32 %s19, 2
      %s26 = sadd.s32 %s19, 1
      %s27 = ssub.s32 %s19, %s26
      %p28 = scmp.eq.s32.totalorder %s27, 0
      %s30 = sadd.s32 %s29, 1
      %s31 = scalar_select %p28, %s29, %s30
      %p34 = pneg %p28
      %p35 = scmp.eq.s32.totalorder %s19, 1
      %p36 = por %p34, %p35
      %p37 = scmp.ne.s32.totalorder %s29, %s32
      %p38 = scmp.eq.s32.totalorder %s19, 0
      %p39 = por %p37, %p38
      %p40 = scmp.ne.s32.totalorder %s29, %s32
      %p41 = scmp.eq.s32.totalorder %s24, 1
      %p42 = por %p40, %p41
      %p43 = scmp.ne.s32.totalorder %s32, %s33
      %p44 = scmp.eq.s32.totalorder %s24, 0
      %p45 = por %p43, %p44
      %p46 = scmp.ne.s32.totalorder %s32, %s33
      %p47 = scmp.eq.s32.totalorder %s25, 1
      %p48 = por %p46, %p47
      %p50 = scmp.ne.s32.totalorder %s33, %s49
      %p51 = scmp.eq.s32.totalorder %s25, 0
      %p52 = por %p50, %p51
      %s54 = sadd.s32 %s53, 1
      %p57 = scmp.eq.s32.totalorder %s19, 1
      %p58 = scmp.ne.s32.totalorder %s53, %s55
      %p59 = scmp.eq.s32.totalorder %s19, 0
      %p60 = por %p58, %p59
      %p61 = scmp.ne.s32.totalorder %s53, %s55
      %p62 = scmp.eq.s32.totalorder %s24, 1
      %p63 = por %p61, %p62
      %p64 = scmp.ne.s32.totalorder %s55, %s56
      %p65 = scmp.eq.s32.totalorder %s24, 0
      %p66 = por %p64, %p65
      %p67 = scmp.ne.s32.totalorder %s55, %s56
      %p68 = scmp.eq.s32.totalorder %s25, 1
      %p69 = por %p67, %p68
      %p71 = scmp.ne.s32.totalorder %s56, %s70
      %p72 = scmp.eq.s32.totalorder %s25, 0
      %p73 = por %p71, %p72
      %s75 = sadd.s32 %s74, 1
      %p78 = scmp.eq.s32.totalorder %s19, 1
      %p79 = scmp.ne.s32.totalorder %s74, %s76
      %p80 = scmp.eq.s32.totalorder %s19, 0
      %p81 = por %p79, %p80
      %p82 = scmp.ne.s32.totalorder %s74, %s76
      %p83 = scmp.eq.s32.totalorder %s24, 1
      %p84 = por %p82, %p83
      %p85 = scmp.ne.s32.totalorder %s76, %s77
      %p86 = scmp.eq.s32.totalorder %s24, 0
      %p87 = por %p85, %p86
      %p88 = scmp.ne.s32.totalorder %s76, %s77
      %p89 = scmp.eq.s32.totalorder %s25, 1
      %p90 = por %p88, %p89
      %p92 = scmp.ne.s32.totalorder %s77, %s91
      %p93 = scmp.eq.s32.totalorder %s25, 0
      %p94 = por %p92, %p93
      %s96 = sadd.s32 %s95, 1
      %p99 = scmp.eq.s32.totalorder %s19, 1
      %p100 = scmp.ne.s32.totalorder %s95, %s97
      %p101 = scmp.eq.s32.totalorder %s19, 0
      %p102 = por %p100, %p101
      %p103 = scmp.ne.s32.totalorder %s95, %s97
      %p104 = scmp.eq.s32.totalorder %s24, 1
      %p105 = por %p103, %p104
      %p106 = scmp.ne.s32.totalorder %s97, %s98
      %p107 = scmp.eq.s32.totalorder %s24, 0
      %p108 = por %p106, %p107
      %p109 = scmp.ne.s32.totalorder %s97, %s98
      %p110 = scmp.eq.s32.totalorder %s25, 1
      %p111 = por %p109, %p110
      %p113 = scmp.ne.s32.totalorder %s98, %s112
      %p114 = scmp.eq.s32.totalorder %s25, 0
      %p115 = por %p113, %p114
      %s117 = sadd.s32 %s116, 1
      %p120 = scmp.eq.s32.totalorder %s19, 1
      %p121 = scmp.ne.s32.totalorder %s116, %s118
      %p122 = scmp.eq.s32.totalorder %s19, 0
      %p123 = por %p121, %p122
      %p124 = scmp.ne.s32.totalorder %s116, %s118
      %p125 = scmp.eq.s32.totalorder %s24, 1
      %p126 = por %p124, %p125
      %p127 = scmp.ne.s32.totalorder %s118, %s119
      %p128 = scmp.eq.s32.totalorder %s24, 0
      %p129 = por %p127, %p128
      %p130 = scmp.ne.s32.totalorder %s118, %s119
      %p131 = scmp.eq.s32.totalorder %s25, 1
      %p132 = por %p130, %p131
      %p134 = scmp.ne.s32.totalorder %s119, %s133
      %p135 = scmp.eq.s32.totalorder %s25, 0
      %p136 = por %p134, %p135
      %s137 = ssub.s32 %s19, %s26
      %p138 = scmp.eq.s32.totalorder %s137, 0
      %s140 = sadd.s32 %s139, 1
      %s141 = scalar_select %p138, %s139, %s140
      %p144 = pneg %p138
      %p145 = scmp.eq.s32.totalorder %s19, 1
      %p146 = por %p144, %p145
      %p147 = scmp.ne.s32.totalorder %s139, %s142
      %p148 = scmp.eq.s32.totalorder %s19, 0
      %p149 = por %p147, %p148
      %p150 = scmp.ne.s32.totalorder %s139, %s142
      %p151 = scmp.eq.s32.totalorder %s24, 1
      %p152 = por %p150, %p151
      %p153 = scmp.ne.s32.totalorder %s142, %s143
      %p154 = scmp.eq.s32.totalorder %s24, 0
      %p155 = por %p153, %p154
      %p156 = scmp.ne.s32.totalorder %s142, %s143
      %p157 = scmp.eq.s32.totalorder %s25, 1
      %p158 = por %p156, %p157
      %p160 = scmp.ne.s32.totalorder %s143, %s159
      %p161 = scmp.eq.s32.totalorder %s25, 0
      %p162 = por %p160, %p161
      %p163 = scmp.le.s32.totalorder 1, %s19
      %p164 = scmp.lt.s32.totalorder %s19, 3
      %p165 = pnand %p163, %p164
      %p166 = pneg %p165
      // Predicated region
      $region9: #{tpu_custom_call.1} parent=5 // pred_check
        _
      $region10: #{tpu_custom_call.1} parent=5 // pred_check_branch
        %168 = sbr.rel (%p165) target = $region12
      $region11: #{tpu_custom_call.1} parent=5 // pred_region
        %s169 = ssub.s32 %s19, 1
        // Predicated region
        $region13: #{tpu_custom_call.1} parent=11 // pred_check
          %p170 = pneg %p66
        $region14: #{tpu_custom_call.1} parent=11 // pred_check_branch
          %172 = sbr.rel (%p170) target = $region16
        $region15: #{tpu_custom_call.1} parent=11 // pred_region
          %174 = vsyncadd [#allocation6], 0
          %s175 = sshll.u32 %s1, 4
          %s176 = int_to_ptr.hbm [resolvable:$true] %s175
          %s177 = sshll.u32 [#allocation5], 4
          %s178 = int_to_ptr.vmem [resolvable:$true] %s177
          %183 = dma.hbm_to_vmem [thread:$0]  %s176, 8192, %s178, [#allocation6], 512, 512, 32
        $region16: #{tpu_custom_call.1} parent=11 // pred_fallthru
          _
        // Predicated region
        $region17: #{tpu_custom_call.1} parent=11 // pred_check
          %p184 = pneg %p87
        $region18: #{tpu_custom_call.1} parent=11 // pred_check_branch
          %186 = sbr.rel (%p184) target = $region20
        $region19: #{tpu_custom_call.1} parent=11 // pred_region
          %188 = vsyncadd [#allocation6], 0
          %s190 = sshll.u32 %s2, 4
          %s191 = int_to_ptr.hbm [resolvable:$true] %s190
          %s192 = sshll.u32 [#allocation7], 4
          %s193 = int_to_ptr.vmem [resolvable:$true] %s192
          %195 = dma.hbm_to_vmem [thread:$0]  %s191, 64, %s193, [#allocation6]
        $region20: #{tpu_custom_call.1} parent=11 // pred_fallthru
          _
        // Predicated region
        $region21: #{tpu_custom_call.1} parent=11 // pred_check
          %p196 = pneg %p108
        $region22: #{tpu_custom_call.1} parent=11 // pred_check_branch
          %198 = sbr.rel (%p196) target = $region24
        $region23: #{tpu_custom_call.1} parent=11 // pred_region
          %200 = vsyncadd [#allocation9], 0
          %s201 = sshll.u32 %s3, 4
          %s202 = int_to_ptr.hbm [resolvable:$true] %s201
          %s203 = sshll.u32 [#allocation8], 4
          %s204 = int_to_ptr.vmem [resolvable:$true] %s203
          %209 = dma.hbm_to_vmem [thread:$0]  %s202, 8192, %s204, [#allocation9], 128, 128, 8
        $region24: #{tpu_custom_call.1} parent=11 // pred_fallthru
          _
        // Predicated region
        $region25: #{tpu_custom_call.1} parent=11 // pred_check
          %p210 = pneg %p129
        $region26: #{tpu_custom_call.1} parent=11 // pred_check_branch
          %212 = sbr.rel (%p210) target = $region28
        $region27: #{tpu_custom_call.1} parent=11 // pred_region
          _
        $region28: #{tpu_custom_call.1} parent=11 // pred_fallthru
          _
      $region12: #{tpu_custom_call.1} parent=5 // pred_fallthru
        _
      %p213 = scmp.lt.s32.totalorder %s19, 2
      // Predicated region
      $region29: #{tpu_custom_call.1} parent=5 // pred_check
        %p214 = pneg %p213
      $region30: #{tpu_custom_call.1} parent=5 // pred_check_branch
        %216 = sbr.rel (%p214) target = $region32
      $region31: #{tpu_custom_call.1} parent=5 // pred_region
        // Predicated region
        $region33: #{tpu_custom_call.1} parent=31 // pred_check
          %p217 = pneg %p39
        $region34: #{tpu_custom_call.1} parent=31 // pred_check_branch
          %219 = sbr.rel (%p217) target = $region36
        $region35: #{tpu_custom_call.1} parent=31 // pred_region
          %s220 = sand.u32 %s29, 1
          %s221 = scalar_lea.sflag [#allocation3], %s220
          %s222 = sand.u32 %s29, 1
          %s223 = smul.addr %s222, 32
          %s224 = scalar_lea.vmem [#allocation2], %s223
          %s225 = smul.u32 4, %s19
          %227 = vsyncadd %s221, 0
          %s228 = smul.addr %s225, 8
          %s229 = scalar_lea.hbm %s0, %s228
          %s230 = sshll.u32 %s229, 4
          %s231 = int_to_ptr.hbm [resolvable:$true] %s230
          %s232 = sshll.u32 %s224, 4
          %s233 = int_to_ptr.vmem [resolvable:$true] %s232
          %238 = dma.hbm_to_vmem [thread:$0]  %s231, 512, %s233, %s221, 128, 128, 8
        $region36: #{tpu_custom_call.1} parent=31 // pred_fallthru
          _
      $region32: #{tpu_custom_call.1} parent=5 // pred_fallthru
        _
      %p239 = scmp.le.s32.totalorder 1, %s19
      %p240 = scmp.lt.s32.totalorder %s19, 3
      %p241 = pnand %p239, %p240
      %p242 = pneg %p241
      // Predicated region
      $region37: #{tpu_custom_call.1} parent=5 // pred_check
        _
      $region38: #{tpu_custom_call.1} parent=5 // pred_check_branch
        %244 = sbr.rel (%p241) target = $region40
      $region39: #{tpu_custom_call.1} parent=5 // pred_region
        %s245 = ssub.s32 %s19, 1
        %s246 = sand.u32 %s32, 1
        %s247 = scalar_lea.sflag [#allocation3], %s246
        %s248 = sand.u32 %s32, 1
        %s249 = smul.addr %s248, 32
        %s250 = scalar_lea.vmem [#allocation2], %s249
        // Predicated region
        $region41: #{tpu_custom_call.1} parent=39 // pred_check
          %p251 = pneg %p45
        $region42: #{tpu_custom_call.1} parent=39 // pred_check_branch
          %253 = sbr.rel (%p251) target = $region44
        $region43: #{tpu_custom_call.1} parent=39 // pred_region
          %255 = dma.done %s247, 512
        $region44: #{tpu_custom_call.1} parent=39 // pred_fallthru
          _
        // Predicated region
        $region45: #{tpu_custom_call.1} parent=39 // pred_check
          %p256 = pneg %p66
        $region46: #{tpu_custom_call.1} parent=39 // pred_check_branch
          %258 = sbr.rel (%p256) target = $region48
        $region47: #{tpu_custom_call.1} parent=39 // pred_region
          %260 = dma.done [#allocation6], 8192
        $region48: #{tpu_custom_call.1} parent=39 // pred_fallthru
          _
        // Predicated region
        $region49: #{tpu_custom_call.1} parent=39 // pred_check
          %p261 = pneg %p87
        $region50: #{tpu_custom_call.1} parent=39 // pred_check_branch
          %263 = sbr.rel (%p261) target = $region52
        $region51: #{tpu_custom_call.1} parent=39 // pred_region
          %265 = dma.done [#allocation6], 64
        $region52: #{tpu_custom_call.1} parent=39 // pred_fallthru
          _
        // Predicated region
        $region53: #{tpu_custom_call.1} parent=39 // pred_check
          %p266 = pneg %p108
        $region54: #{tpu_custom_call.1} parent=39 // pred_check_branch
          %268 = sbr.rel (%p266) target = $region56
        $region55: #{tpu_custom_call.1} parent=39 // pred_region
          %270 = dma.done [#allocation9], 8192
        $region56: #{tpu_custom_call.1} parent=39 // pred_fallthru
          _
        %s271 = sand.u32 %s32, 1
        %s272 = scalar_lea.sflag [#allocation3], %s271
        %s273 = sand.u32 %s32, 1
        %s274 = smul.addr %s273, 32
        %s275 = scalar_lea.vmem [#allocation2], %s274
        %p276 = pneg %p45
        %p277 = pneg %p42
        %p278 = pneg %p66
        %p279 = pneg %p63
        %p280 = pneg %p87
        %p281 = pneg %p84
        %p282 = pneg %p108
        %p283 = pneg %p105
        %p284 = pneg %p129
        %p285 = pneg %p126
        %p286 = pneg %p155
        %p287 = pneg %p152
        %s288 = sand.u32 %s142, 1
        %s289 = scalar_lea.sflag [#allocation4], %s288
        %s290 = sand.u32 %s142, 1
        %s291 = smul.addr %s290, 32
        %s292 = scalar_lea.vmem [#allocation10], %s291
        %s293 = smul.u32 4, %s24
        %s294 = smul.u32 4, %s24
        %v295 = vld [vmem:[%s250] sm:$0xff]
        %v296 = vld [vmem:[%s250 + $0x8] sm:$0xff]
        %v297 = vld [vmem:[%s250 + $0x10] sm:$0xff]
        %v298 = vld [vmem:[%s250 + $0x18] sm:$0xff]
        %v299 = vld [vmem:[#allocation5] sm:$0xff]
        %v300 = vld [vmem:[#allocation5 + $0x8] sm:$0xff]
        %v301 = vld [vmem:[#allocation5 + $0x10] sm:$0xff]
        %v302 = vld [vmem:[#allocation5 + $0x18] sm:$0xff]
        %v303 = vld [vmem:[#allocation5 + $0x20] sm:$0xff]
        %v304 = vld [vmem:[#allocation5 + $0x28] sm:$0xff]
        %v305 = vld [vmem:[#allocation5 + $0x30] sm:$0xff]
        %v306 = vld [vmem:[#allocation5 + $0x38] sm:$0xff]
        %v307 = vld [vmem:[#allocation5 + $0x40] sm:$0xff]
        %v308 = vld [vmem:[#allocation5 + $0x48] sm:$0xff]
        %v309 = vld [vmem:[#allocation5 + $0x50] sm:$0xff]
        %v310 = vld [vmem:[#allocation5 + $0x58] sm:$0xff]
        %v311 = vld [vmem:[#allocation5 + $0x60] sm:$0xff]
        %v312 = vld [vmem:[#allocation5 + $0x68] sm:$0xff]
        %v313 = vld [vmem:[#allocation5 + $0x70] sm:$0xff]
        %v314 = vld [vmem:[#allocation5 + $0x78] sm:$0xff]
        %v315 = vld [vmem:[#allocation5 + $0x80] sm:$0xff]
        %v316 = vld [vmem:[#allocation5 + $0x88] sm:$0xff]
        %v317 = vld [vmem:[#allocation5 + $0x90] sm:$0xff]
        %v318 = vld [vmem:[#allocation5 + $0x98] sm:$0xff]
        %v319 = vld [vmem:[#allocation5 + $0xa0] sm:$0xff]
        %v320 = vld [vmem:[#allocation5 + $0xa8] sm:$0xff]
        %v321 = vld [vmem:[#allocation5 + $0xb0] sm:$0xff]
        %v322 = vld [vmem:[#allocation5 + $0xb8] sm:$0xff]
        %v323 = vld [vmem:[#allocation5 + $0xc0] sm:$0xff]
        %v324 = vld [vmem:[#allocation5 + $0xc8] sm:$0xff]
        %v325 = vld [vmem:[#allocation5 + $0xd0] sm:$0xff]
        %v326 = vld [vmem:[#allocation5 + $0xd8] sm:$0xff]
        %v327 = vld [vmem:[#allocation5 + $0xe0] sm:$0xff]
        %v328 = vld [vmem:[#allocation5 + $0xe8] sm:$0xff]
        %v329 = vld [vmem:[#allocation5 + $0xf0] sm:$0xff]
        %v330 = vld [vmem:[#allocation5 + $0xf8] sm:$0xff]
        %v331 = vld [vmem:[#allocation5 + $0x100] sm:$0xff]
        %v332 = vld [vmem:[#allocation5 + $0x108] sm:$0xff]
        %v333 = vld [vmem:[#allocation5 + $0x110] sm:$0xff]
        %v334 = vld [vmem:[#allocation5 + $0x118] sm:$0xff]
        %v335 = vld [vmem:[#allocation5 + $0x120] sm:$0xff]
        %v336 = vld [vmem:[#allocation5 + $0x128] sm:$0xff]
        %v337 = vld [vmem:[#allocation5 + $0x130] sm:$0xff]
        %v338 = vld [vmem:[#allocation5 + $0x138] sm:$0xff]
        %v339 = vld [vmem:[#allocation5 + $0x140] sm:$0xff]
        %v340 = vld [vmem:[#allocation5 + $0x148] sm:$0xff]
        %v341 = vld [vmem:[#allocation5 + $0x150] sm:$0xff]
        %v342 = vld [vmem:[#allocation5 + $0x158] sm:$0xff]
        %v343 = vld [vmem:[#allocation5 + $0x160] sm:$0xff]
        %v344 = vld [vmem:[#allocation5 + $0x168] sm:$0xff]
        %v345 = vld [vmem:[#allocation5 + $0x170] sm:$0xff]
        %v346 = vld [vmem:[#allocation5 + $0x178] sm:$0xff]
        %v347 = vld [vmem:[#allocation5 + $0x180] sm:$0xff]
        %v348 = vld [vmem:[#allocation5 + $0x188] sm:$0xff]
        %v349 = vld [vmem:[#allocation5 + $0x190] sm:$0xff]
        %v350 = vld [vmem:[#allocation5 + $0x198] sm:$0xff]
        %v351 = vld [vmem:[#allocation5 + $0x1a0] sm:$0xff]
        %v352 = vld [vmem:[#allocation5 + $0x1a8] sm:$0xff]
        %v353 = vld [vmem:[#allocation5 + $0x1b0] sm:$0xff]
        %v354 = vld [vmem:[#allocation5 + $0x1b8] sm:$0xff]
        %v355 = vld [vmem:[#allocation5 + $0x1c0] sm:$0xff]
        %v356 = vld [vmem:[#allocation5 + $0x1c8] sm:$0xff]
        %v357 = vld [vmem:[#allocation5 + $0x1d0] sm:$0xff]
        %v358 = vld [vmem:[#allocation5 + $0x1d8] sm:$0xff]
        %v359 = vld [vmem:[#allocation5 + $0x1e0] sm:$0xff]
        %v360 = vld [vmem:[#allocation5 + $0x1e8] sm:$0xff]
        %v361 = vld [vmem:[#allocation5 + $0x1f0] sm:$0xff]
        %v362 = vld [vmem:[#allocation5 + $0x1f8] sm:$0xff]
        %v363 = vld [vmem:[#allocation7] sm:$0xf]
        %v365 = vperm.slane %v363, 0
        %v366 = vperm.slane %v363, 1
        %v367 = vperm.slane %v363, 2
        %v368 = vperm.slane %v363, 3
        %373 = vmatpush.msra.mxu0 %v359
        %374 = vmatpush.msra.mxu0 %v355
        %375 = vmatpush.msra.mxu0 %v351
        %376 = vmatpush.msra.mxu0 %v347
        %377 = vmatpush.msra.mxu0 %v343
        %378 = vmatpush.msra.mxu0 %v339
        %379 = vmatpush.msra.mxu0 %v335
        %380 = vmatpush.msra.mxu0 %v331
        %381 = vmatpush.msra.mxu0 %v327
        %382 = vmatpush.msra.mxu0 %v323
        %383 = vmatpush.msra.mxu0 %v319
        %384 = vmatpush.msra.mxu0 %v315
        %385 = vmatpush.msra.mxu0 %v311
        %386 = vmatpush.msra.mxu0 %v307
        %387 = vmatpush.msra.mxu0 %v303
        %388 = vmatpush.msra.mxu0 %v299
        %389 = vmatmul.f32.gmra.mxu0 %v295
        %v390 = vpop.f32.mrf.mxu0
        %v391 = vadd.f32 %v365, %v390
        %392 = vmatmul.f32.gmra.mxu0 %v296
        %v393 = vpop.f32.mrf.mxu0
        %v394 = vadd.f32 %v365, %v393
        %395 = vmatmul.f32.gmra.mxu0 %v297
        %v396 = vpop.f32.mrf.mxu0
        %v397 = vadd.f32 %v365, %v396
        %398 = vmatmul.f32.gmra.mxu0 %v298
        %v399 = vpop.f32.mrf.mxu0
        %v400 = vadd.f32 %v365, %v399
        %401 = vdwg.mxu0
        %402 = vmatpush.msra.mxu0 %v360
        %403 = vmatpush.msra.mxu0 %v356
        %404 = vmatpush.msra.mxu0 %v352
        %405 = vmatpush.msra.mxu0 %v348
        %406 = vmatpush.msra.mxu0 %v344
        %407 = vmatpush.msra.mxu0 %v340
        %408 = vmatpush.msra.mxu0 %v336
        %409 = vmatpush.msra.mxu0 %v332
        %410 = vmatpush.msra.mxu0 %v328
        %411 = vmatpush.msra.mxu0 %v324
        %412 = vmatpush.msra.mxu0 %v320
        %413 = vmatpush.msra.mxu0 %v316
        %414 = vmatpush.msra.mxu0 %v312
        %415 = vmatpush.msra.mxu0 %v308
        %416 = vmatpush.msra.mxu0 %v304
        %417 = vmatpush.msra.mxu0 %v300
        %418 = vmatmul.f32.gmra.mxu0 %v295
        %v419 = vpop.f32.mrf.mxu0
        %v420 = vadd.f32 %v366, %v419
        %421 = vmatmul.f32.gmra.mxu0 %v296
        %v422 = vpop.f32.mrf.mxu0
        %v423 = vadd.f32 %v366, %v422
        %424 = vmatmul.f32.gmra.mxu0 %v297
        %v425 = vpop.f32.mrf.mxu0
        %v426 = vadd.f32 %v366, %v425
        %427 = vmatmul.f32.gmra.mxu0 %v298
        %v428 = vpop.f32.mrf.mxu0
        %v429 = vadd.f32 %v366, %v428
        %430 = vdwg.mxu0
        %431 = vmatpush.msra.mxu0 %v361
        %432 = vmatpush.msra.mxu0 %v357
        %433 = vmatpush.msra.mxu0 %v353
        %434 = vmatpush.msra.mxu0 %v349
        %435 = vmatpush.msra.mxu0 %v345
        %436 = vmatpush.msra.mxu0 %v341
        %437 = vmatpush.msra.mxu0 %v337
        %438 = vmatpush.msra.mxu0 %v333
        %439 = vmatpush.msra.mxu0 %v329
        %440 = vmatpush.msra.mxu0 %v325
        %441 = vmatpush.msra.mxu0 %v321
        %442 = vmatpush.msra.mxu0 %v317
        %443 = vmatpush.msra.mxu0 %v313
        %444 = vmatpush.msra.mxu0 %v309
        %445 = vmatpush.msra.mxu0 %v305
        %446 = vmatpush.msra.mxu0 %v301
        %447 = vmatmul.f32.gmra.mxu0 %v295
        %v448 = vpop.f32.mrf.mxu0
        %v449 = vadd.f32 %v367, %v448
        %450 = vmatmul.f32.gmra.mxu0 %v296
        %v451 = vpop.f32.mrf.mxu0
        %v452 = vadd.f32 %v367, %v451
        %453 = vmatmul.f32.gmra.mxu0 %v297
        %v454 = vpop.f32.mrf.mxu0
        %v455 = vadd.f32 %v367, %v454
        %456 = vmatmul.f32.gmra.mxu0 %v298
        %v457 = vpop.f32.mrf.mxu0
        %v458 = vadd.f32 %v367, %v457
        %459 = vdwg.mxu0
        %460 = vmatpush.msra.mxu0 %v362
        %461 = vmatpush.msra.mxu0 %v358
        %462 = vmatpush.msra.mxu0 %v354
        %463 = vmatpush.msra.mxu0 %v350
        %464 = vmatpush.msra.mxu0 %v346
        %465 = vmatpush.msra.mxu0 %v342
        %466 = vmatpush.msra.mxu0 %v338
        %467 = vmatpush.msra.mxu0 %v334
        %468 = vmatpush.msra.mxu0 %v330
        %469 = vmatpush.msra.mxu0 %v326
        %470 = vmatpush.msra.mxu0 %v322
        %471 = vmatpush.msra.mxu0 %v318
        %472 = vmatpush.msra.mxu0 %v314
        %473 = vmatpush.msra.mxu0 %v310
        %474 = vmatpush.msra.mxu0 %v306
        %475 = vmatpush.msra.mxu0 %v302
        %476 = vmatmul.f32.gmra.mxu0 %v295
        %v477 = vpop.f32.mrf.mxu0
        %v478 = vadd.f32 %v368, %v477
        %479 = vmatmul.f32.gmra.mxu0 %v296
        %v480 = vpop.f32.mrf.mxu0
        %v481 = vadd.f32 %v368, %v480
        %482 = vmatmul.f32.gmra.mxu0 %v297
        %v483 = vpop.f32.mrf.mxu0
        %v484 = vadd.f32 %v368, %v483
        %485 = vmatmul.f32.gmra.mxu0 %v298
        %v486 = vpop.f32.mrf.mxu0
        %v487 = vadd.f32 %v368, %v486
        %488 = vdwg.mxu0
        %v489 = vmul.f32 %v391, 0.5
        %v490 = vmul.f32 %v420, 0.5
        %v491 = vmul.f32 %v449, 0.5
        %v492 = vmul.f32 %v478, 0.5
        %v493 = vmul.f32 %v394, 0.5
        %v494 = vmul.f32 %v423, 0.5
        %v495 = vmul.f32 %v452, 0.5
        %v496 = vmul.f32 %v481, 0.5
        %v497 = vmul.f32 %v397, 0.5
        %v498 = vmul.f32 %v426, 0.5
        %v499 = vmul.f32 %v455, 0.5
        %v500 = vmul.f32 %v484, 0.5
        %v501 = vmul.f32 %v400, 0.5
        %v502 = vmul.f32 %v429, 0.5
        %v503 = vmul.f32 %v458, 0.5
        %v504 = vmul.f32 %v487, 0.5
        %v505 = vmul.f32 %v391, %v391
        %v506 = vmul.f32 %v420, %v420
        %v507 = vmul.f32 %v449, %v449
        %v508 = vmul.f32 %v478, %v478
        %v509 = vmul.f32 %v394, %v394
        %v510 = vmul.f32 %v423, %v423
        %v511 = vmul.f32 %v452, %v452
        %v512 = vmul.f32 %v481, %v481
        %v513 = vmul.f32 %v397, %v397
        %v514 = vmul.f32 %v426, %v426
        %v515 = vmul.f32 %v455, %v455
        %v516 = vmul.f32 %v484, %v484
        %v517 = vmul.f32 %v400, %v400
        %v518 = vmul.f32 %v429, %v429
        %v519 = vmul.f32 %v458, %v458
        %v520 = vmul.f32 %v487, %v487
        %v521 = vmul.f32 %v505, %v391
        %v522 = vmul.f32 %v506, %v420
        %v523 = vmul.f32 %v507, %v449
        %v524 = vmul.f32 %v508, %v478
        %v525 = vmul.f32 %v509, %v394
        %v526 = vmul.f32 %v510, %v423
        %v527 = vmul.f32 %v511, %v452
        %v528 = vmul.f32 %v512, %v481
        %v529 = vmul.f32 %v513, %v397
        %v530 = vmul.f32 %v514, %v426
        %v531 = vmul.f32 %v515, %v455
        %v532 = vmul.f32 %v516, %v484
        %v533 = vmul.f32 %v517, %v400
        %v534 = vmul.f32 %v518, %v429
        %v535 = vmul.f32 %v519, %v458
        %v536 = vmul.f32 %v520, %v487
        %v537 = vmul.f32 %v521, 0.044715
        %v538 = vmul.f32 %v522, 0.044715
        %v539 = vmul.f32 %v523, 0.044715
        %v540 = vmul.f32 %v524, 0.044715
        %v541 = vmul.f32 %v525, 0.044715
        %v542 = vmul.f32 %v526, 0.044715
        %v543 = vmul.f32 %v527, 0.044715
        %v544 = vmul.f32 %v528, 0.044715
        %v545 = vmul.f32 %v529, 0.044715
        %v546 = vmul.f32 %v530, 0.044715
        %v547 = vmul.f32 %v531, 0.044715
        %v548 = vmul.f32 %v532, 0.044715
        %v549 = vmul.f32 %v533, 0.044715
        %v550 = vmul.f32 %v534, 0.044715
        %v551 = vmul.f32 %v535, 0.044715
        %v552 = vmul.f32 %v536, 0.044715
        %v553 = vadd.f32 %v391, %v537
        %v554 = vadd.f32 %v420, %v538
        %v555 = vadd.f32 %v449, %v539
        %v556 = vadd.f32 %v478, %v540
        %v557 = vadd.f32 %v394, %v541
        %v558 = vadd.f32 %v423, %v542
        %v559 = vadd.f32 %v452, %v543
        %v560 = vadd.f32 %v481, %v544
        %v561 = vadd.f32 %v397, %v545
        %v562 = vadd.f32 %v426, %v546
        %v563 = vadd.f32 %v455, %v547
        %v564 = vadd.f32 %v484, %v548
        %v565 = vadd.f32 %v400, %v549
        %v566 = vadd.f32 %v429, %v550
        %v567 = vadd.f32 %v458, %v551
        %v568 = vadd.f32 %v487, %v552
        %v569 = vmul.f32 %v553, 0.7978846
        %v570 = vmul.f32 %v554, 0.7978846
        %v571 = vmul.f32 %v555, 0.7978846
        %v572 = vmul.f32 %v556, 0.7978846
        %v573 = vmul.f32 %v557, 0.7978846
        %v574 = vmul.f32 %v558, 0.7978846
        %v575 = vmul.f32 %v559, 0.7978846
        %v576 = vmul.f32 %v560, 0.7978846
        %v577 = vmul.f32 %v561, 0.7978846
        %v578 = vmul.f32 %v562, 0.7978846
        %v579 = vmul.f32 %v563, 0.7978846
        %v580 = vmul.f32 %v564, 0.7978846
        %v581 = vmul.f32 %v565, 0.7978846
        %v582 = vmul.f32 %v566, 0.7978846
        %v583 = vmul.f32 %v567, 0.7978846
        %v584 = vmul.f32 %v568, 0.7978846
        %v585 = vtanh.pop %v569
        %v586 = vtanh.pop %v570
        %v587 = vtanh.pop %v571
        %v588 = vtanh.pop %v572
        %v589 = vtanh.pop %v573
        %v590 = vtanh.pop %v574
        %v591 = vtanh.pop %v575
        %v592 = vtanh.pop %v576
        %v593 = vtanh.pop %v577
        %v594 = vtanh.pop %v578
        %v595 = vtanh.pop %v579
        %v596 = vtanh.pop %v580
        %v597 = vtanh.pop %v581
        %v598 = vtanh.pop %v582
        %v599 = vtanh.pop %v583
        %v600 = vtanh.pop %v584
        %v601 = vadd.f32 %v585, 1.0
        %v602 = vadd.f32 %v586, 1.0
        %v603 = vadd.f32 %v587, 1.0
        %v604 = vadd.f32 %v588, 1.0
        %v605 = vadd.f32 %v589, 1.0
        %v606 = vadd.f32 %v590, 1.0
        %v607 = vadd.f32 %v591, 1.0
        %v608 = vadd.f32 %v592, 1.0
        %v609 = vadd.f32 %v593, 1.0
        %v610 = vadd.f32 %v594, 1.0
        %v611 = vadd.f32 %v595, 1.0
        %v612 = vadd.f32 %v596, 1.0
        %v613 = vadd.f32 %v597, 1.0
        %v614 = vadd.f32 %v598, 1.0
        %v615 = vadd.f32 %v599, 1.0
        %v616 = vadd.f32 %v600, 1.0
        %v617 = vmul.f32 %v489, %v601
        %v618 = vmul.f32 %v490, %v602
        %v619 = vmul.f32 %v491, %v603
        %v620 = vmul.f32 %v492, %v604
        %v621 = vmul.f32 %v493, %v605
        %v622 = vmul.f32 %v494, %v606
        %v623 = vmul.f32 %v495, %v607
        %v624 = vmul.f32 %v496, %v608
        %v625 = vmul.f32 %v497, %v609
        %v626 = vmul.f32 %v498, %v610
        %v627 = vmul.f32 %v499, %v611
        %v628 = vmul.f32 %v500, %v612
        %v629 = vmul.f32 %v501, %v613
        %v630 = vmul.f32 %v502, %v614
        %v631 = vmul.f32 %v503, %v615
        %v632 = vmul.f32 %v504, %v616
        %v633 = vld [vmem:[#allocation8] sm:$0xff]
        %v634 = vld [vmem:[#allocation8 + $0x8] sm:$0xff]
        %v635 = vld [vmem:[#allocation8 + $0x10] sm:$0xff]
        %v636 = vld [vmem:[#allocation8 + $0x18] sm:$0xff]
        %v637 = vld [vmem:[#allocation8 + $0x20] sm:$0xff]
        %v638 = vld [vmem:[#allocation8 + $0x28] sm:$0xff]
        %v639 = vld [vmem:[#allocation8 + $0x30] sm:$0xff]
        %v640 = vld [vmem:[#allocation8 + $0x38] sm:$0xff]
        %v641 = vld [vmem:[#allocation8 + $0x40] sm:$0xff]
        %v642 = vld [vmem:[#allocation8 + $0x48] sm:$0xff]
        %v643 = vld [vmem:[#allocation8 + $0x50] sm:$0xff]
        %v644 = vld [vmem:[#allocation8 + $0x58] sm:$0xff]
        %v645 = vld [vmem:[#allocation8 + $0x60] sm:$0xff]
        %v646 = vld [vmem:[#allocation8 + $0x68] sm:$0xff]
        %v647 = vld [vmem:[#allocation8 + $0x70] sm:$0xff]
        %v648 = vld [vmem:[#allocation8 + $0x78] sm:$0xff]
        %v649 = vld [vmem:[#allocation8 + $0x80] sm:$0xff]
        %v650 = vld [vmem:[#allocation8 + $0x88] sm:$0xff]
        %v651 = vld [vmem:[#allocation8 + $0x90] sm:$0xff]
        %v652 = vld [vmem:[#allocation8 + $0x98] sm:$0xff]
        %v653 = vld [vmem:[#allocation8 + $0xa0] sm:$0xff]
        %v654 = vld [vmem:[#allocation8 + $0xa8] sm:$0xff]
        %v655 = vld [vmem:[#allocation8 + $0xb0] sm:$0xff]
        %v656 = vld [vmem:[#allocation8 + $0xb8] sm:$0xff]
        %v657 = vld [vmem:[#allocation8 + $0xc0] sm:$0xff]
        %v658 = vld [vmem:[#allocation8 + $0xc8] sm:$0xff]
        %v659 = vld [vmem:[#allocation8 + $0xd0] sm:$0xff]
        %v660 = vld [vmem:[#allocation8 + $0xd8] sm:$0xff]
        %v661 = vld [vmem:[#allocation8 + $0xe0] sm:$0xff]
        %v662 = vld [vmem:[#allocation8 + $0xe8] sm:$0xff]
        %v663 = vld [vmem:[#allocation8 + $0xf0] sm:$0xff]
        %v664 = vld [vmem:[#allocation8 + $0xf8] sm:$0xff]
        %v665 = vld [vmem:[#allocation8 + $0x100] sm:$0xff]
        %v666 = vld [vmem:[#allocation8 + $0x108] sm:$0xff]
        %v667 = vld [vmem:[#allocation8 + $0x110] sm:$0xff]
        %v668 = vld [vmem:[#allocation8 + $0x118] sm:$0xff]
        %v669 = vld [vmem:[#allocation8 + $0x120] sm:$0xff]
        %v670 = vld [vmem:[#allocation8 + $0x128] sm:$0xff]
        %v671 = vld [vmem:[#allocation8 + $0x130] sm:$0xff]
        %v672 = vld [vmem:[#allocation8 + $0x138] sm:$0xff]
        %v673 = vld [vmem:[#allocation8 + $0x140] sm:$0xff]
        %v674 = vld [vmem:[#allocation8 + $0x148] sm:$0xff]
        %v675 = vld [vmem:[#allocation8 + $0x150] sm:$0xff]
        %v676 = vld [vmem:[#allocation8 + $0x158] sm:$0xff]
        %v677 = vld [vmem:[#allocation8 + $0x160] sm:$0xff]
        %v678 = vld [vmem:[#allocation8 + $0x168] sm:$0xff]
        %v679 = vld [vmem:[#allocation8 + $0x170] sm:$0xff]
        %v680 = vld [vmem:[#allocation8 + $0x178] sm:$0xff]
        %v681 = vld [vmem:[#allocation8 + $0x180] sm:$0xff]
        %v682 = vld [vmem:[#allocation8 + $0x188] sm:$0xff]
        %v683 = vld [vmem:[#allocation8 + $0x190] sm:$0xff]
        %v684 = vld [vmem:[#allocation8 + $0x198] sm:$0xff]
        %v685 = vld [vmem:[#allocation8 + $0x1a0] sm:$0xff]
        %v686 = vld [vmem:[#allocation8 + $0x1a8] sm:$0xff]
        %v687 = vld [vmem:[#allocation8 + $0x1b0] sm:$0xff]
        %v688 = vld [vmem:[#allocation8 + $0x1b8] sm:$0xff]
        %v689 = vld [vmem:[#allocation8 + $0x1c0] sm:$0xff]
        %v690 = vld [vmem:[#allocation8 + $0x1c8] sm:$0xff]
        %v691 = vld [vmem:[#allocation8 + $0x1d0] sm:$0xff]
        %v692 = vld [vmem:[#allocation8 + $0x1d8] sm:$0xff]
        %v693 = vld [vmem:[#allocation8 + $0x1e0] sm:$0xff]
        %v694 = vld [vmem:[#allocation8 + $0x1e8] sm:$0xff]
        %v695 = vld [vmem:[#allocation8 + $0x1f0] sm:$0xff]
        %v696 = vld [vmem:[#allocation8 + $0x1f8] sm:$0xff]
        %v697 = vld [vmem:[%s4] sm:$0x1]
        %v699 = vperm.slane %v697, 0
        %701 = vmatpush.msra.mxu0 %v648
        %702 = vmatpush.msra.mxu0 %v647
        %703 = vmatpush.msra.mxu0 %v646
        %704 = vmatpush.msra.mxu0 %v645
        %705 = vmatpush.msra.mxu0 %v644
        %706 = vmatpush.msra.mxu0 %v643
        %707 = vmatpush.msra.mxu0 %v642
        %708 = vmatpush.msra.mxu0 %v641
        %709 = vmatpush.msra.mxu0 %v640
        %710 = vmatpush.msra.mxu0 %v639
        %711 = vmatpush.msra.mxu0 %v638
        %712 = vmatpush.msra.mxu0 %v637
        %713 = vmatpush.msra.mxu0 %v636
        %714 = vmatpush.msra.mxu0 %v635
        %715 = vmatpush.msra.mxu0 %v634
        %716 = vmatpush.msra.mxu0 %v633
        %717 = vmatmul.f32.gmra.mxu0 %v617
        %v718 = vpop.f32.mrf.mxu0
        %v719 = vadd.f32 %v699, %v718
        %720 = vmatmul.f32.gmra.mxu0 %v621
        %v721 = vpop.f32.mrf.mxu0
        %v722 = vadd.f32 %v699, %v721
        %723 = vmatmul.f32.gmra.mxu0 %v625
        %v724 = vpop.f32.mrf.mxu0
        %v725 = vadd.f32 %v699, %v724
        %726 = vmatmul.f32.gmra.mxu0 %v629
        %v727 = vpop.f32.mrf.mxu0
        %v728 = vadd.f32 %v699, %v727
        %729 = vdwg.mxu0
        %730 = vmatpush.msra.mxu0 %v664
        %731 = vmatpush.msra.mxu0 %v663
        %732 = vmatpush.msra.mxu0 %v662
        %733 = vmatpush.msra.mxu0 %v661
        %734 = vmatpush.msra.mxu0 %v660
        %735 = vmatpush.msra.mxu0 %v659
        %736 = vmatpush.msra.mxu0 %v658
        %737 = vmatpush.msra.mxu0 %v657
        %738 = vmatpush.msra.mxu0 %v656
        %739 = vmatpush.msra.mxu0 %v655
        %740 = vmatpush.msra.mxu0 %v654
        %741 = vmatpush.msra.mxu0 %v653
        %742 = vmatpush.msra.mxu0 %v652
        %743 = vmatpush.msra.mxu0 %v651
        %744 = vmatpush.msra.mxu0 %v650
        %745 = vmatpush.msra.mxu0 %v649
        %746 = vmatmul.f32.gmra.mxu0 %v618
        %v747 = vpop.f32.mrf.mxu0
        %v748 = vadd.f32 %v719, %v747
        %749 = vmatmul.f32.gmra.mxu0 %v622
        %v750 = vpop.f32.mrf.mxu0
        %v751 = vadd.f32 %v722, %v750
        %752 = vmatmul.f32.gmra.mxu0 %v626
        %v753 = vpop.f32.mrf.mxu0
        %v754 = vadd.f32 %v725, %v753
        %755 = vmatmul.f32.gmra.mxu0 %v630
        %v756 = vpop.f32.mrf.mxu0
        %v757 = vadd.f32 %v728, %v756
        %758 = vdwg.mxu0
        %759 = vmatpush.msra.mxu0 %v680
        %760 = vmatpush.msra.mxu0 %v679
        %761 = vmatpush.msra.mxu0 %v678
        %762 = vmatpush.msra.mxu0 %v677
        %763 = vmatpush.msra.mxu0 %v676
        %764 = vmatpush.msra.mxu0 %v675
        %765 = vmatpush.msra.mxu0 %v674
        %766 = vmatpush.msra.mxu0 %v673
        %767 = vmatpush.msra.mxu0 %v672
        %768 = vmatpush.msra.mxu0 %v671
        %769 = vmatpush.msra.mxu0 %v670
        %770 = vmatpush.msra.mxu0 %v669
        %771 = vmatpush.msra.mxu0 %v668
        %772 = vmatpush.msra.mxu0 %v667
        %773 = vmatpush.msra.mxu0 %v666
        %774 = vmatpush.msra.mxu0 %v665
        %775 = vmatmul.f32.gmra.mxu0 %v619
        %v776 = vpop.f32.mrf.mxu0
        %v777 = vadd.f32 %v748, %v776
        %778 = vmatmul.f32.gmra.mxu0 %v623
        %v779 = vpop.f32.mrf.mxu0
        %v780 = vadd.f32 %v751, %v779
        %781 = vmatmul.f32.gmra.mxu0 %v627
        %v782 = vpop.f32.mrf.mxu0
        %v783 = vadd.f32 %v754, %v782
        %784 = vmatmul.f32.gmra.mxu0 %v631
        %v785 = vpop.f32.mrf.mxu0
        %v786 = vadd.f32 %v757, %v785
        %787 = vdwg.mxu0
        %788 = vmatpush.msra.mxu0 %v696
        %789 = vmatpush.msra.mxu0 %v695
        %790 = vmatpush.msra.mxu0 %v694
        %791 = vmatpush.msra.mxu0 %v693
        %792 = vmatpush.msra.mxu0 %v692
        %793 = vmatpush.msra.mxu0 %v691
        %794 = vmatpush.msra.mxu0 %v690
        %795 = vmatpush.msra.mxu0 %v689
        %796 = vmatpush.msra.mxu0 %v688
        %797 = vmatpush.msra.mxu0 %v687
        %798 = vmatpush.msra.mxu0 %v686
        %799 = vmatpush.msra.mxu0 %v685
        %800 = vmatpush.msra.mxu0 %v684
        %801 = vmatpush.msra.mxu0 %v683
        %802 = vmatpush.msra.mxu0 %v682
        %803 = vmatpush.msra.mxu0 %v681
        %804 = vmatmul.f32.gmra.mxu0 %v620
        %v805 = vpop.f32.mrf.mxu0
        %v806 = vadd.f32 %v777, %v805
        %807 = vmatmul.f32.gmra.mxu0 %v624
        %v808 = vpop.f32.mrf.mxu0
        %v809 = vadd.f32 %v780, %v808
        %810 = vmatmul.f32.gmra.mxu0 %v628
        %v811 = vpop.f32.mrf.mxu0
        %v812 = vadd.f32 %v783, %v811
        %813 = vmatmul.f32.gmra.mxu0 %v632
        %v814 = vpop.f32.mrf.mxu0
        %v815 = vadd.f32 %v786, %v814
        %816 = vdwg.mxu0
        %817 = vst [vmem:[%s292] sm:$0xff] %v806
        %818 = vst [vmem:[%s292 + $0x8] sm:$0xff] %v809
        %819 = vst [vmem:[%s292 + $0x10] sm:$0xff] %v812
        %820 = vst [vmem:[%s292 + $0x18] sm:$0xff] %v815
        %s821 = sand.u32 %s142, 1
        %s822 = scalar_lea.sflag [#allocation4], %s821
        %s823 = sand.u32 %s142, 1
        %s824 = smul.addr %s823, 32
        %s825 = scalar_lea.vmem [#allocation10], %s824
        // Predicated region
        $region57: #{tpu_custom_call.1} parent=39 // pred_check
          %p826 = pneg %p152
        $region58: #{tpu_custom_call.1} parent=39 // pred_check_branch
          %828 = sbr.rel (%p826) target = $region60
        $region59: #{tpu_custom_call.1} parent=39 // pred_region
          %s829 = smul.u32 4, %s24
          %831 = vsyncadd %s822, 0
          %s832 = smul.addr %s829, 8
          %s833 = scalar_lea.hbm %s5, %s832
          %s834 = sshll.u32 %s825, 4
          %s835 = int_to_ptr.vmem [resolvable:$true] %s834
          %s836 = sshll.u32 %s833, 4
          %s837 = int_to_ptr.hbm [resolvable:$true] %s836
          %842 = dma.vmem_to_hbm [thread:$0]  %s835, 512, %s837, %s822, 128, 128, 8
        $region60: #{tpu_custom_call.1} parent=39 // pred_fallthru
          _
      $region40: #{tpu_custom_call.1} parent=5 // pred_fallthru
        _
      %p843 = scmp.le.s32.totalorder 2, %s19
      // Predicated region
      $region61: #{tpu_custom_call.1} parent=5 // pred_check
        %p844 = pneg %p843
      $region62: #{tpu_custom_call.1} parent=5 // pred_check_branch
        %846 = sbr.rel (%p844) target = $region64
      $region63: #{tpu_custom_call.1} parent=5 // pred_region
        %s847 = ssub.s32 %s19, 2
        // Predicated region
        $region65: #{tpu_custom_call.1} parent=63 // pred_check
          %p848 = pneg %p158
        $region66: #{tpu_custom_call.1} parent=63 // pred_check_branch
          %850 = sbr.rel (%p848) target = $region68
        $region67: #{tpu_custom_call.1} parent=63 // pred_region
          %s851 = sand.u32 %s143, 1
          %s852 = scalar_lea.sflag [#allocation4], %s851
          %s853 = sand.u32 %s143, 1
          %s854 = smul.addr %s853, 32
          %s855 = scalar_lea.vmem [#allocation10], %s854
          %857 = dma.done %s852, 512
        $region68: #{tpu_custom_call.1} parent=63 // pred_fallthru
          _
      $region64: #{tpu_custom_call.1} parent=5 // pred_fallthru
        _
    $region6: #{tpu_custom_call.1} parent=1 // loop_footer
      %s23 = sadd.s32 1, %s19
    $region7: #{tpu_custom_call.1} parent=1 // loop_footer_branch
      %18 = sbr.rel target = $region3
    $region8: #{tpu_custom_call.1} parent=1 // loop_exit
      _
    %858 = vsyncpa [#allocation3], 1
    %s859 = scalar_lea.sflag [#allocation3], 1
    %860 = vsyncpa %s859, 1
    %861 = vsyncpa [#allocation6], 1
    %862 = vsyncpa [#allocation9], 1
    %863 = vsyncpa [#allocation4], 1
    %s864 = scalar_lea.sflag [#allocation4], 1
    %865 = vsyncpa %s864, 1

</llo_original>
